<compile_context>
chip_gen: v7x
topology: tpu7x:2x2x1
jax: 0.10.0
libtpu: 0.0.40
codegen_flags: <defaults>
</compile_context>

<pallas_src>
import math
import functools

import jax
import jax.numpy as jnp
import numpy as np
from jax import lax
from jax.experimental import pallas as pl
from jax.experimental.pallas import tpu as pltpu


def _rope_mha_kernel(xq_ref, xk_ref, xv_ref, bias_ref,
                     cosq_ref, sinq_ref, cosk_ref, sink_ref,
                     wq_ref, bq_ref, wk_ref, bk_ref, wv_ref, bv_ref,
                     wo_ref, bo_ref,
                     out_ref, kc_ref, vc_ref,
                     kb_ref, vb_ref, ctx_ref,
                     *, n_head, d_k):
    qi = pl.program_id(1)
    d2 = d_k // 2
    f32 = jnp.float32
    bf16 = jnp.bfloat16

    def rope(x, cos, sin):
        # google-style rotary: (first half, second half) form the (re, im) pair.
        a = x[:, :d2]
        b = x[:, d2:]
        return jnp.concatenate([a * cos - b * sin, a * sin + b * cos], axis=-1)

    # ---- K / V projection + RoPE: once per batch element (first q tile). ----
    # f32 results go to the cache outputs; bf16 per-head (lane-aligned) copies
    # are kept resident in VMEM scratch for the attention path.
    @pl.when(qi == 0)
    def _():
        k_full = jnp.dot(xk_ref[0], wk_ref[...],
                         preferred_element_type=f32) + bk_ref[...]     # (T2, F)
        v_full = jnp.dot(xv_ref[0], wv_ref[...],
                         preferred_element_type=f32) + bv_ref[...]     # (T2, F)
        vc_ref[0] = v_full
        cos_k = cosk_ref[...]
        sin_k = sink_ref[...]
        for h in range(n_head):
            lo = h * d_k
            kh = rope(k_full[:, lo:lo + d_k], cos_k, sin_k)            # (T2,d_k)
            kc_ref[0, :, lo:lo + d_k] = kh                             # f32 cache
            kb_ref[h] = kh.astype(bf16)
            vb_ref[h] = v_full[:, lo:lo + d_k].astype(bf16)

    # ---- Q projection for this tile (1/sqrt(d_k) folded into Wq/bq). --------
    q_full = jnp.dot(xq_ref[0], wq_ref[...],
                     preferred_element_type=f32) + bq_ref[...]         # (tq, F)
    cos_q = cosq_ref[...]
    sin_q = sinq_ref[...]
    bias = bias_ref[0]                      # (1, T2) additive mask (0 / -1e30)
    neg = bias < 0.0                        # padding predicate, hoisted

    dn = (((1,), (1,)), ((), ()))           # q @ k^T : contract last dims
    for h in range(n_head):
        lo = h * d_k
        qh = rope(q_full[:, lo:lo + d_k], cos_q, sin_q).astype(bf16)   # (tq,d_k)
        scores = lax.dot_general(qh, kb_ref[h], dn,
                                 preferred_element_type=f32)           # (tq,T2)
        scores = scores + bias
        smax = jnp.max(scores, axis=-1, keepdims=True)
        p = jnp.exp(scores - smax)
        denom = jnp.sum(p, axis=-1, keepdims=True)
        attn = p / denom
        attn = jnp.where(neg, 0.0, attn)                 # zero padded columns
        ctx = jnp.dot(attn.astype(bf16), vb_ref[h],
                      preferred_element_type=f32)                      # (tq,d_k)
        ctx_ref[:, lo:lo + d_k] = ctx.astype(bf16)

    # ---- Single full-width bf16 output projection for the whole q tile. -----
    out_ref[0] = (jnp.dot(ctx_ref[...], wo_ref[...],
                          preferred_element_type=f32) + bo_ref[...]
                  ).astype(out_ref.dtype)


def _pick_q_tile(T1, q_block):
    """Largest 8-aligned divisor of T1 that is <= q_block (avoids collapsing a
    non-divisible T1 into one huge tile)."""
    if T1 <= q_block:
        return T1
    for cand in range(min(q_block, T1), 7, -1):
        if T1 % cand == 0 and cand % 8 == 0:
            return cand
    return T1   # ragged T1 with no usable divisor: single tile fallback


def rope_mha_forward(xq, xk, xv, mask, cos, sin, params, n_head, *,
                     q_block=256):
    """Pallas wrapper. Returns (output (B,T1,F), (k_cache, v_cache)), caches
    shaped (B, T2, H, d_k) (head_first=False, matching the torch module)."""
    B, T1, F = xq.shape
    T2 = xk.shape[1]
    H = n_head
    d_k = F // H
    d2 = d_k // 2
    assert F % H == 0 and d_k % 2 == 0
    assert T1 == T2, "self-attention layout (rope positions shared by q and k)"
    scale = 1.0 / math.sqrt(d_k)

    f32 = jnp.float32
    bf16 = jnp.bfloat16

    wq, bq, wk, bk, wv, bv, wo, bo = params
    # torch Linear: y = x @ W.T + b with W shaped (out, in); pre-transpose once
    # and pre-cast to bf16 (MXU fast path).  Fold the 1/sqrt(d_k) score scale
    # into the query projection (exact: linear in q, commutes with RoPE).
    wq_t = (wq.T * scale).astype(bf16)
    wk_t = wk.T.astype(bf16)
    wv_t = wv.T.astype(bf16)
    wo_t = wo.T.astype(bf16)
    bq_r = (bq * scale).reshape(1, F).astype(f32)
    bk_r = bk.reshape(1, F).astype(f32)
    bv_r = bv.reshape(1, F).astype(f32)
    bo_r = bo.reshape(1, F).astype(f32)

    # bf16 activations into the projection GEMMs (halves input DMA as well).
    xq_b = xq.astype(bf16)
    xk_b = xk.astype(bf16)
    xv_b = xv.astype(bf16)

    cosf = cos.astype(f32)          # (T, d2)
    sinf = sin.astype(f32)

    # Additive mask bias: 0 keep, -1e30 pad (no -inf / NaN hazard).
    bias = jnp.where(mask == 0.0, -1e30, 0.0).astype(f32)        # (B,1,T2)

    tq = _pick_q_tile(T1, q_block)
    nq = T1 // tq

    kernel = functools.partial(_rope_mha_kernel, n_head=H, d_k=d_k)

    grid = (B, nq)
    in_specs = [
        pl.BlockSpec((1, tq, F), lambda b, q: (b, q, 0)),      # xq (bf16 tile)
        pl.BlockSpec((1, T2, F), lambda b, q: (b, 0, 0)),      # xk (bf16)
        pl.BlockSpec((1, T2, F), lambda b, q: (b, 0, 0)),      # xv (bf16)
        pl.BlockSpec((1, 1, T2), lambda b, q: (b, 0, 0)),      # mask bias
        pl.BlockSpec((tq, d2), lambda b, q: (q, 0)),           # cos (q rows)
        pl.BlockSpec((tq, d2), lambda b, q: (q, 0)),           # sin (q rows)
        pl.BlockSpec((T2, d2), lambda b, q: (0, 0)),           # cos (k rows)
        pl.BlockSpec((T2, d2), lambda b, q: (0, 0)),           # sin (k rows)
        pl.BlockSpec((F, F), lambda b, q: (0, 0)),             # Wq^T*scale bf16
        pl.BlockSpec((1, F), lambda b, q: (0, 0)),             # bq*scale
        pl.BlockSpec((F, F), lambda b, q: (0, 0)),             # Wk^T bf16
        pl.BlockSpec((1, F), lambda b, q: (0, 0)),             # bk
        pl.BlockSpec((F, F), lambda b, q: (0, 0)),             # Wv^T bf16
        pl.BlockSpec((1, F), lambda b, q: (0, 0)),             # bv
        pl.BlockSpec((F, F), lambda b, q: (0, 0)),             # Wo^T bf16
        pl.BlockSpec((1, F), lambda b, q: (0, 0)),             # bo
    ]
    out_specs = [
        pl.BlockSpec((1, tq, F), lambda b, q: (b, q, 0)),      # out
        pl.BlockSpec((1, T2, F), lambda b, q: (b, 0, 0)),      # k cache (flat)
        pl.BlockSpec((1, T2, F), lambda b, q: (b, 0, 0)),      # v cache (flat)
    ]
    out_shape = (
        jax.ShapeDtypeStruct((B, T1, F), f32),
        jax.ShapeDtypeStruct((B, T2, F), f32),
        jax.ShapeDtypeStruct((B, T2, F), f32),
    )
    scratch_shapes = [
        pltpu.VMEM((H, T2, d_k), bf16),   # roped K, per head, bf16 resident
        pltpu.VMEM((H, T2, d_k), bf16),   # V, per head, bf16 resident
        pltpu.VMEM((tq, F), bf16),        # per-tile context for output GEMM
    ]

    out, kc_flat, vc_flat = pl.pallas_call(
        kernel,
        out_shape=out_shape,
        grid_spec=pltpu.PrefetchScalarGridSpec(
            num_scalar_prefetch=0,
            grid=grid,
            in_specs=in_specs,
            out_specs=out_specs,
            scratch_shapes=scratch_shapes,
        ),
        compiler_params=pltpu.CompilerParams(
            dimension_semantics=("parallel", "arbitrary"),
            vmem_limit_bytes=64 * 1024 * 1024,
        ),
    )(xq_b, xk_b, xv_b, bias, cosf, sinf, cosf, sinf,
      wq_t, bq_r, wk_t, bk_r, wv_t, bv_r, wo_t, bo_r)

    # Cache already lives in (B, T2, H*d_k) layout -> free contiguous reshape.
    k_cache = kc_flat.reshape(B, T2, H, d_k)
    v_cache = vc_flat.reshape(B, T2, H, d_k)
    return out, (k_cache, v_cache)


def rope_mha_reference(xq, xk, xv, mask, cos, sin, params, n_head):
    """Pure-JAX f32 reference reproducing the torch module (eval, google rope)."""
    wq, bq, wk, bk, wv, bv, wo, bo = params
    B, T1, F = xq.shape
    T2 = xk.shape[1]
    H = n_head
    d_k = F // H
    d2 = d_k // 2

    q = (xq @ wq.T + bq).reshape(B, T1, H, d_k)
    k = (xk @ wk.T + bk).reshape(B, T2, H, d_k)
    v = (xv @ wv.T + bv).reshape(B, T2, H, d_k)

    def rope(x, c, s):
        a, b = x[..., :d2], x[..., d2:]
        c = c[None, :, None, :]
        s = s[None, :, None, :]
        return jnp.concatenate([a * c - b * s, a * s + b * c], axis=-1)

    q = rope(q, cos, sin)
    k = rope(k, cos, sin)
    new_cache = (k, v)

    qh = jnp.transpose(q, (0, 2, 1, 3))
    kh = jnp.transpose(k, (0, 2, 1, 3))
    vh = jnp.transpose(v, (0, 2, 1, 3))

    scores = jnp.einsum("bhqd,bhkd->bhqk", qh, kh) / math.sqrt(d_k)
    invalid = (mask == 0.0)[:, None, :, :]          # (B,1,1,T2)
    scores = jnp.where(invalid, -jnp.inf, scores)
    attn = jax.nn.softmax(scores, axis=-1)
    attn = jnp.where(invalid, 0.0, attn)
    ctx = jnp.einsum("bhqk,bhkd->bhqd", attn, vh)   # (B,H,T1,d_k)
    ctx = jnp.transpose(ctx, (0, 2, 1, 3)).reshape(B, T1, H * d_k)
    out = ctx @ wo.T + bo
    return out, new_cache


if __name__ == "__main__":
    B, T, F, H = 2, 16, 256, 2
    d_k = F // H    # 128 (lane-aligned head dim for the per-head slices)

    key = jax.random.PRNGKey(0)
    keys = jax.random.split(key, 12)
    xq = jax.random.normal(keys[0], (B, T, F), jnp.float32)
    xk = jax.random.normal(keys[1], (B, T, F), jnp.float32)
    xv = jax.random.normal(keys[2], (B, T, F), jnp.float32)

    # padding mask (B, 1, T): batch 0 keeps all 16, batch 1 keeps first 12
    lengths = jnp.array([16, 12])
    mask = (jnp.arange(T)[None, :] < lengths[:, None]).astype(jnp.float32)[:, None, :]

    # rope freqs_cis (google style), theta = 10000
    theta = 10000.0
    freqs = 1.0 / (theta ** (jnp.arange(0, d_k, 2, dtype=jnp.float32) / d_k))
    angles = jnp.arange(T, dtype=jnp.float32)[:, None] * freqs[None, :]
    cos, sin = jnp.cos(angles), jnp.sin(angles)      # (T, d_k//2)

    # deterministic parameter init (shapes as in nn.Linear of the module)
    def w(k, shape):
        return 0.05 * jax.random.normal(k, shape, jnp.float32)
    params = (
        w(keys[3], (F, F)), w(keys[4], (F,)),        # linear_q
        w(keys[5], (F, F)), w(keys[6], (F,)),        # linear_k
        w(keys[7], (F, F)), w(keys[8], (F,)),        # linear_v
        w(keys[9], (F, F)), w(keys[10], (F,)),       # linear_out
    )

    out, (kc, vc) = rope_mha_forward(xq, xk, xv, mask, cos, sin, params, H)
    jax.block_until_ready(out)

    ref_out, (ref_kc, ref_vc) = rope_mha_reference(xq, xk, xv, mask, cos, sin,
                                                   params, H)

    # All projections (including K/V feeding the cache) run through bf16 MXU
    # matmuls with f32 accumulation, so compare with bf16-appropriate tolerances.
    np.testing.assert_allclose(np.asarray(kc), np.asarray(ref_kc), rtol=2e-2, atol=2e-2)
    np.testing.assert_allclose(np.asarray(vc), np.asarray(ref_vc), rtol=2e-2, atol=2e-2)
    np.testing.assert_allclose(np.asarray(out), np.asarray(ref_out), rtol=5e-2, atol=5e-2)

    print("KERNEL_OK")
</pallas_src>

<mosaic_0001>
module attributes {stable_mosaic.version = 11 : i64} {
  func.func @_rope_mha_kernel(%arg0: i32, %arg1: i32, %arg2: memref<1x16x256xbf16, #tpu.memory_space<vmem>>, %arg3: memref<1x16x256xbf16, #tpu.memory_space<vmem>>, %arg4: memref<1x16x256xbf16, #tpu.memory_space<vmem>>, %arg5: memref<1x1x16xf32, #tpu.memory_space<vmem>>, %arg6: memref<16x64xf32, #tpu.memory_space<vmem>>, %arg7: memref<16x64xf32, #tpu.memory_space<vmem>>, %arg8: memref<16x64xf32, #tpu.memory_space<vmem>>, %arg9: memref<16x64xf32, #tpu.memory_space<vmem>>, %arg10: memref<256x256xbf16, #tpu.memory_space<vmem>>, %arg11: memref<1x256xf32, #tpu.memory_space<vmem>>, %arg12: memref<256x256xbf16, #tpu.memory_space<vmem>>, %arg13: memref<1x256xf32, #tpu.memory_space<vmem>>, %arg14: memref<256x256xbf16, #tpu.memory_space<vmem>>, %arg15: memref<1x256xf32, #tpu.memory_space<vmem>>, %arg16: memref<256x256xbf16, #tpu.memory_space<vmem>>, %arg17: memref<1x256xf32, #tpu.memory_space<vmem>>, %arg18: memref<1x16x256xf32, #tpu.memory_space<vmem>>, %arg19: memref<1x16x256xf32, #tpu.memory_space<vmem>>, %arg20: memref<1x16x256xf32, #tpu.memory_space<vmem>>, %arg21: memref<2x16x128xbf16, #tpu.memory_space<vmem>>, %arg22: memref<2x16x128xbf16, #tpu.memory_space<vmem>>, %arg23: memref<16x256xbf16, #tpu.memory_space<vmem>>) attributes {dimension_semantics = [#tpu.dimension_semantics<parallel>, #tpu.dimension_semantics<arbitrary>], iteration_bounds = array<i64: 2, 1>, scalar_prefetch = 0 : i64, scratch_operands = 3 : i64, tpu.core_type = #tpu.core_type<tc>, window_params = [{transform_indices = @transform_0, window_bounds = array<i64: 1, 16, 256>}, {transform_indices = @transform_1, window_bounds = array<i64: 1, 16, 256>}, {transform_indices = @transform_2, window_bounds = array<i64: 1, 16, 256>}, {transform_indices = @transform_3, window_bounds = array<i64: 1, 1, 16>}, {transform_indices = @transform_4, window_bounds = array<i64: 16, 64>}, {transform_indices = @transform_5, window_bounds = array<i64: 16, 64>}, {pipeline_mode = #tpu.pipeline_mode<synchronous>, transform_indices = @transform_6, window_bounds = array<i64: 16, 64>}, {pipeline_mode = #tpu.pipeline_mode<synchronous>, transform_indices = @transform_7, window_bounds = array<i64: 16, 64>}, {pipeline_mode = #tpu.pipeline_mode<synchronous>, transform_indices = @transform_8, window_bounds = array<i64: 256, 256>}, {pipeline_mode = #tpu.pipeline_mode<synchronous>, transform_indices = @transform_9, window_bounds = array<i64: 1, 256>}, {pipeline_mode = #tpu.pipeline_mode<synchronous>, transform_indices = @transform_10, window_bounds = array<i64: 256, 256>}, {pipeline_mode = #tpu.pipeline_mode<synchronous>, transform_indices = @transform_11, window_bounds = array<i64: 1, 256>}, {pipeline_mode = #tpu.pipeline_mode<synchronous>, transform_indices = @transform_12, window_bounds = array<i64: 256, 256>}, {pipeline_mode = #tpu.pipeline_mode<synchronous>, transform_indices = @transform_13, window_bounds = array<i64: 1, 256>}, {pipeline_mode = #tpu.pipeline_mode<synchronous>, transform_indices = @transform_14, window_bounds = array<i64: 256, 256>}, {pipeline_mode = #tpu.pipeline_mode<synchronous>, transform_indices = @transform_15, window_bounds = array<i64: 1, 256>}, {transform_indices = @transform_16, window_bounds = array<i64: 1, 16, 256>}, {transform_indices = @transform_17, window_bounds = array<i64: 1, 16, 256>}, {transform_indices = @transform_18, window_bounds = array<i64: 1, 16, 256>}]} {
    %c0_i32 = arith.constant 0 : i32
    %0 = arith.cmpi eq, %arg1, %c0_i32 : i32
    %1 = arith.extui %0 : i1 to i32
    %c0_i32_0 = arith.constant 0 : i32
    %2 = arith.cmpi ne, %1, %c0_i32_0 : i32
    scf.if %2 {
      %c0_49 = arith.constant 0 : index
      %c0_50 = arith.constant 0 : index
      %c0_51 = arith.constant 0 : index
      %95 = vector.load %arg3[%c0_49, %c0_50, %c0_51] : memref<1x16x256xbf16, #tpu.memory_space<vmem>>, vector<1x16x256xbf16>
      %96 = vector.shape_cast %95 : vector<1x16x256xbf16> to vector<16x256xbf16>
      %c0_52 = arith.constant 0 : index
      %c0_53 = arith.constant 0 : index
      %97 = vector.load %arg12[%c0_52, %c0_53] : memref<256x256xbf16, #tpu.memory_space<vmem>>, vector<256x256xbf16>
      %cst_54 = arith.constant dense<0.000000e+00> : vector<16x256xf32>
      %98 = tpu.matmul %96, %97, %cst_54 {dimension_numbers = #tpu.dot_dimension_numbers<[1], [0], [0], [1], [0, 0, 1, 1], [], []>} : vector<16x256xbf16>, vector<256x256xbf16>, vector<16x256xf32> -> vector<16x256xf32>
      %c0_55 = arith.constant 0 : index
      %c0_56 = arith.constant 0 : index
      %99 = vector.load %arg13[%c0_55, %c0_56] : memref<1x256xf32, #tpu.memory_space<vmem>>, vector<1x256xf32>
      %100 = vector.broadcast %99 : vector<1x256xf32> to vector<16x256xf32>
      %101 = arith.addf %98, %100 : vector<16x256xf32>
      %c0_57 = arith.constant 0 : index
      %c0_58 = arith.constant 0 : index
      %c0_59 = arith.constant 0 : index
      %102 = vector.load %arg4[%c0_57, %c0_58, %c0_59] : memref<1x16x256xbf16, #tpu.memory_space<vmem>>, vector<1x16x256xbf16>
      %103 = vector.shape_cast %102 : vector<1x16x256xbf16> to vector<16x256xbf16>
      %c0_60 = arith.constant 0 : index
      %c0_61 = arith.constant 0 : index
      %104 = vector.load %arg14[%c0_60, %c0_61] : memref<256x256xbf16, #tpu.memory_space<vmem>>, vector<256x256xbf16>
      %cst_62 = arith.constant dense<0.000000e+00> : vector<16x256xf32>
      %105 = tpu.matmul %103, %104, %cst_62 {dimension_numbers = #tpu.dot_dimension_numbers<[1], [0], [0], [1], [0, 0, 1, 1], [], []>} : vector<16x256xbf16>, vector<256x256xbf16>, vector<16x256xf32> -> vector<16x256xf32>
      %c0_63 = arith.constant 0 : index
      %c0_64 = arith.constant 0 : index
      %106 = vector.load %arg15[%c0_63, %c0_64] : memref<1x256xf32, #tpu.memory_space<vmem>>, vector<1x256xf32>
      %107 = vector.broadcast %106 : vector<1x256xf32> to vector<16x256xf32>
      %108 = arith.addf %105, %107 : vector<16x256xf32>
      %c0_65 = arith.constant 0 : index
      %c0_66 = arith.constant 0 : index
      %c0_67 = arith.constant 0 : index
      %109 = vector.load %arg20[%c0_65, %c0_66, %c0_67] : memref<1x16x256xf32, #tpu.memory_space<vmem>>, vector<1x16x256xf32>
      %110 = vector.shape_cast %109 : vector<1x16x256xf32> to vector<16x256xf32>
      %111 = vector.shape_cast %108 : vector<16x256xf32> to vector<1x16x256xf32>
      tpu.vector_store %arg20[%c0_65, %c0_66, %c0_67], %111 {strides = array<i32>} : memref<1x16x256xf32, #tpu.memory_space<vmem>>, vector<1x16x256xf32>,
      %c0_68 = arith.constant 0 : index
      %c0_69 = arith.constant 0 : index
      %112 = vector.load %arg8[%c0_68, %c0_69] : memref<16x64xf32, #tpu.memory_space<vmem>>, vector<16x64xf32>
      %c0_70 = arith.constant 0 : index
      %c0_71 = arith.constant 0 : index
      %113 = vector.load %arg9[%c0_70, %c0_71] : memref<16x64xf32, #tpu.memory_space<vmem>>, vector<16x64xf32>
      %114 = vector.extract_strided_slice %101 {offsets = [0, 0], sizes = [16, 128], strides = [1, 1]} : vector<16x256xf32> to vector<16x128xf32>
      %115 = vector.extract_strided_slice %114 {offsets = [0, 0], sizes = [16, 64], strides = [1, 1]} : vector<16x128xf32> to vector<16x64xf32>
      %116 = vector.extract_strided_slice %114 {offsets = [0, 64], sizes = [16, 64], strides = [1, 1]} : vector<16x128xf32> to vector<16x64xf32>
      %117 = arith.mulf %115, %112 : vector<16x64xf32>
      %118 = arith.mulf %116, %113 : vector<16x64xf32>
      %119 = arith.subf %117, %118 : vector<16x64xf32>
      %120 = arith.mulf %115, %113 : vector<16x64xf32>
      %121 = arith.mulf %116, %112 : vector<16x64xf32>
      %122 = arith.addf %120, %121 : vector<16x64xf32>
      %123 = tpu.concatenate %119, %122 in 1 : vector<16x64xf32>, vector<16x64xf32> -> vector<16x128xf32>
      %c0_72 = arith.constant 0 : index
      %c0_73 = arith.constant 0 : index
      %c0_74 = arith.constant 0 : index
      %124 = vector.load %arg19[%c0_72, %c0_73, %c0_74] : memref<1x16x256xf32, #tpu.memory_space<vmem>>, vector<1x16x128xf32>
      %125 = vector.shape_cast %124 : vector<1x16x128xf32> to vector<16x128xf32>
      %126 = vector.shape_cast %123 : vector<16x128xf32> to vector<1x16x128xf32>
      tpu.vector_store %arg19[%c0_72, %c0_73, %c0_74], %126 {strides = array<i32>} : memref<1x16x256xf32, #tpu.memory_space<vmem>>, vector<1x16x128xf32>,
      %127 = arith.truncf %123 : vector<16x128xf32> to vector<16x128xbf16>
      %c0_75 = arith.constant 0 : index
      %c0_76 = arith.constant 0 : index
      %c0_77 = arith.constant 0 : index
      %128 = vector.load %arg21[%c0_75, %c0_76, %c0_77] : memref<2x16x128xbf16, #tpu.memory_space<vmem>>, vector<1x16x128xbf16>
      %129 = vector.shape_cast %128 : vector<1x16x128xbf16> to vector<16x128xbf16>
      %130 = vector.shape_cast %127 : vector<16x128xbf16> to vector<1x16x128xbf16>
      tpu.vector_store %arg21[%c0_75, %c0_76, %c0_77], %130 {strides = array<i32>} : memref<2x16x128xbf16, #tpu.memory_space<vmem>>, vector<1x16x128xbf16>,
      %131 = vector.extract_strided_slice %108 {offsets = [0, 0], sizes = [16, 128], strides = [1, 1]} : vector<16x256xf32> to vector<16x128xf32>
      %132 = arith.truncf %131 : vector<16x128xf32> to vector<16x128xbf16>
      %c0_78 = arith.constant 0 : index
      %c0_79 = arith.constant 0 : index
      %c0_80 = arith.constant 0 : index
      %133 = vector.load %arg22[%c0_78, %c0_79, %c0_80] : memref<2x16x128xbf16, #tpu.memory_space<vmem>>, vector<1x16x128xbf16>
      %134 = vector.shape_cast %133 : vector<1x16x128xbf16> to vector<16x128xbf16>
      %135 = vector.shape_cast %132 : vector<16x128xbf16> to vector<1x16x128xbf16>
      tpu.vector_store %arg22[%c0_78, %c0_79, %c0_80], %135 {strides = array<i32>} : memref<2x16x128xbf16, #tpu.memory_space<vmem>>, vector<1x16x128xbf16>,
      %136 = vector.extract_strided_slice %101 {offsets = [0, 128], sizes = [16, 128], strides = [1, 1]} : vector<16x256xf32> to vector<16x128xf32>
      %137 = vector.extract_strided_slice %136 {offsets = [0, 0], sizes = [16, 64], strides = [1, 1]} : vector<16x128xf32> to vector<16x64xf32>
      %138 = vector.extract_strided_slice %136 {offsets = [0, 64], sizes = [16, 64], strides = [1, 1]} : vector<16x128xf32> to vector<16x64xf32>
      %139 = arith.mulf %137, %112 : vector<16x64xf32>
      %140 = arith.mulf %138, %113 : vector<16x64xf32>
      %141 = arith.subf %139, %140 : vector<16x64xf32>
      %142 = arith.mulf %137, %113 : vector<16x64xf32>
      %143 = arith.mulf %138, %112 : vector<16x64xf32>
      %144 = arith.addf %142, %143 : vector<16x64xf32>
      %145 = tpu.concatenate %141, %144 in 1 : vector<16x64xf32>, vector<16x64xf32> -> vector<16x128xf32>
      %c0_81 = arith.constant 0 : index
      %c0_82 = arith.constant 0 : index
      %c128_83 = arith.constant 128 : index
      %146 = vector.load %arg19[%c0_81, %c0_82, %c128_83] : memref<1x16x256xf32, #tpu.memory_space<vmem>>, vector<1x16x128xf32>
      %147 = vector.shape_cast %146 : vector<1x16x128xf32> to vector<16x128xf32>
      %148 = vector.shape_cast %145 : vector<16x128xf32> to vector<1x16x128xf32>
      tpu.vector_store %arg19[%c0_81, %c0_82, %c128_83], %148 {strides = array<i32>} : memref<1x16x256xf32, #tpu.memory_space<vmem>>, vector<1x16x128xf32>,
      %149 = arith.truncf %145 : vector<16x128xf32> to vector<16x128xbf16>
      %c1_84 = arith.constant 1 : index
      %c0_85 = arith.constant 0 : index
      %c0_86 = arith.constant 0 : index
      %150 = vector.load %arg21[%c1_84, %c0_85, %c0_86] : memref<2x16x128xbf16, #tpu.memory_space<vmem>>, vector<1x16x128xbf16>
      %151 = vector.shape_cast %150 : vector<1x16x128xbf16> to vector<16x128xbf16>
      %152 = vector.shape_cast %149 : vector<16x128xbf16> to vector<1x16x128xbf16>
      tpu.vector_store %arg21[%c1_84, %c0_85, %c0_86], %152 {strides = array<i32>} : memref<2x16x128xbf16, #tpu.memory_space<vmem>>, vector<1x16x128xbf16>,
      %153 = vector.extract_strided_slice %108 {offsets = [0, 128], sizes = [16, 128], strides = [1, 1]} : vector<16x256xf32> to vector<16x128xf32>
      %154 = arith.truncf %153 : vector<16x128xf32> to vector<16x128xbf16>
      %c1_87 = arith.constant 1 : index
      %c0_88 = arith.constant 0 : index
      %c0_89 = arith.constant 0 : index
      %155 = vector.load %arg22[%c1_87, %c0_88, %c0_89] : memref<2x16x128xbf16, #tpu.memory_space<vmem>>, vector<1x16x128xbf16>
      %156 = vector.shape_cast %155 : vector<1x16x128xbf16> to vector<16x128xbf16>
      %157 = vector.shape_cast %154 : vector<16x128xbf16> to vector<1x16x128xbf16>
      tpu.vector_store %arg22[%c1_87, %c0_88, %c0_89], %157 {strides = array<i32>} : memref<2x16x128xbf16, #tpu.memory_space<vmem>>, vector<1x16x128xbf16>,
    } else {
    }
    %c0 = arith.constant 0 : index
    %c0_1 = arith.constant 0 : index
    %c0_2 = arith.constant 0 : index
    %3 = vector.load %arg2[%c0, %c0_1, %c0_2] : memref<1x16x256xbf16, #tpu.memory_space<vmem>>, vector<1x16x256xbf16>
    %4 = vector.shape_cast %3 : vector<1x16x256xbf16> to vector<16x256xbf16>
    %c0_3 = arith.constant 0 : index
    %c0_4 = arith.constant 0 : index
    %5 = vector.load %arg10[%c0_3, %c0_4] : memref<256x256xbf16, #tpu.memory_space<vmem>>, vector<256x256xbf16>
    %cst = arith.constant dense<0.000000e+00> : vector<16x256xf32>
    %6 = tpu.matmul %4, %5, %cst {dimension_numbers = #tpu.dot_dimension_numbers<[1], [0], [0], [1], [0, 0, 1, 1], [], []>} : vector<16x256xbf16>, vector<256x256xbf16>, vector<16x256xf32> -> vector<16x256xf32>
    %c0_5 = arith.constant 0 : index
    %c0_6 = arith.constant 0 : index
    %7 = vector.load %arg11[%c0_5, %c0_6] : memref<1x256xf32, #tpu.memory_space<vmem>>, vector<1x256xf32>
    %8 = vector.broadcast %7 : vector<1x256xf32> to vector<16x256xf32>
    %9 = arith.addf %6, %8 : vector<16x256xf32>
    %c0_7 = arith.constant 0 : index
    %c0_8 = arith.constant 0 : index
    %10 = vector.load %arg6[%c0_7, %c0_8] : memref<16x64xf32, #tpu.memory_space<vmem>>, vector<16x64xf32>
    %c0_9 = arith.constant 0 : index
    %c0_10 = arith.constant 0 : index
    %11 = vector.load %arg7[%c0_9, %c0_10] : memref<16x64xf32, #tpu.memory_space<vmem>>, vector<16x64xf32>
    %c0_11 = arith.constant 0 : index
    %c0_12 = arith.constant 0 : index
    %c0_13 = arith.constant 0 : index
    %12 = vector.load %arg5[%c0_11, %c0_12, %c0_13] : memref<1x1x16xf32, #tpu.memory_space<vmem>>, vector<1x1x16xf32>
    %13 = vector.shape_cast %12 : vector<1x1x16xf32> to vector<1x16xf32>
    %cst_14 = arith.constant 0.000000e+00 : f32
    %14 = vector.broadcast %cst_14 : f32 to vector<1x16xf32>
    %15 = arith.cmpf olt, %13, %14 : vector<1x16xf32>
    %16 = vector.extract_strided_slice %9 {offsets = [0, 0], sizes = [16, 128], strides = [1, 1]} : vector<16x256xf32> to vector<16x128xf32>
    %17 = vector.extract_strided_slice %16 {offsets = [0, 0], sizes = [16, 64], strides = [1, 1]} : vector<16x128xf32> to vector<16x64xf32>
    %18 = vector.extract_strided_slice %16 {offsets = [0, 64], sizes = [16, 64], strides = [1, 1]} : vector<16x128xf32> to vector<16x64xf32>
    %19 = arith.mulf %17, %10 : vector<16x64xf32>
    %20 = arith.mulf %18, %11 : vector<16x64xf32>
    %21 = arith.subf %19, %20 : vector<16x64xf32>
    %22 = arith.mulf %17, %11 : vector<16x64xf32>
    %23 = arith.mulf %18, %10 : vector<16x64xf32>
    %24 = arith.addf %22, %23 : vector<16x64xf32>
    %25 = tpu.concatenate %21, %24 in 1 : vector<16x64xf32>, vector<16x64xf32> -> vector<16x128xf32>
    %26 = arith.truncf %25 : vector<16x128xf32> to vector<16x128xbf16>
    %c0_15 = arith.constant 0 : index
    %c0_16 = arith.constant 0 : index
    %c0_17 = arith.constant 0 : index
    %27 = vector.load %arg21[%c0_15, %c0_16, %c0_17] : memref<2x16x128xbf16, #tpu.memory_space<vmem>>, vector<1x16x128xbf16>
    %28 = vector.shape_cast %27 : vector<1x16x128xbf16> to vector<16x128xbf16>
    %cst_18 = arith.constant dense<0.000000e+00> : vector<16x16xf32>
    %29 = tpu.matmul %26, %28, %cst_18 {dimension_numbers = #tpu.dot_dimension_numbers<[1], [1], [0], [0], [0, 0, 1, 0], [], []>} : vector<16x128xbf16>, vector<16x128xbf16>, vector<16x16xf32> -> vector<16x16xf32>
    %30 = vector.broadcast %13 : vector<1x16xf32> to vector<16x16xf32>
    %31 = arith.addf %29, %30 : vector<16x16xf32>
    %cst_19 = arith.constant dense<0xFF800000> : vector<16xf32>
    %32 = vector.multi_reduction <maximumf>, %31, %cst_19 [1] : vector<16x16xf32> to vector<16xf32>
    %33 = vector.shape_cast %32 : vector<16xf32> to vector<16x1xf32>
    %34 = vector.broadcast %33 : vector<16x1xf32> to vector<16x16xf32>
    %35 = arith.subf %31, %34 : vector<16x16xf32>
    %36 = math.exp %35 : vector<16x16xf32>
    %cst_20 = arith.constant dense<0.000000e+00> : vector<16xf32>
    %37 = vector.multi_reduction <add>, %36, %cst_20 [1] : vector<16x16xf32> to vector<16xf32>
    %38 = vector.shape_cast %37 : vector<16xf32> to vector<16x1xf32>
    %39 = vector.broadcast %38 : vector<16x1xf32> to vector<16x16xf32>
    %40 = arith.divf %36, %39 : vector<16x16xf32>
    %cst_21 = arith.constant 0.000000e+00 : f32
    %41 = vector.shape_cast %15 : vector<1x16xi1> to vector<1x16xi1>
    %42 = vector.broadcast %41 : vector<1x16xi1> to vector<16x16xi1>
    %43 = vector.broadcast %cst_21 : f32 to vector<16x16xf32>
    %44 = arith.select %42, %43, %40 : vector<16x16xi1>, vector<16x16xf32>
    %45 = arith.truncf %44 : vector<16x16xf32> to vector<16x16xbf16>
    %c0_22 = arith.constant 0 : index
    %c0_23 = arith.constant 0 : index
    %c0_24 = arith.constant 0 : index
    %46 = vector.load %arg22[%c0_22, %c0_23, %c0_24] : memref<2x16x128xbf16, #tpu.memory_space<vmem>>, vector<1x16x128xbf16>
    %47 = vector.shape_cast %46 : vector<1x16x128xbf16> to vector<16x128xbf16>
    %cst_25 = arith.constant dense<0.000000e+00> : vector<16x128xf32>
    %48 = tpu.matmul %45, %47, %cst_25 {dimension_numbers = #tpu.dot_dimension_numbers<[1], [0], [0], [1], [0, 0, 1, 1], [], []>} : vector<16x16xbf16>, vector<16x128xbf16>, vector<16x128xf32> -> vector<16x128xf32>
    %49 = arith.truncf %48 : vector<16x128xf32> to vector<16x128xbf16>
    %c0_26 = arith.constant 0 : index
    %c0_27 = arith.constant 0 : index
    %50 = vector.load %arg23[%c0_26, %c0_27] : memref<16x256xbf16, #tpu.memory_space<vmem>>, vector<16x128xbf16>
    tpu.vector_store %arg23[%c0_26, %c0_27], %49 {strides = array<i32>} : memref<16x256xbf16, #tpu.memory_space<vmem>>, vector<16x128xbf16>,
    %51 = vector.extract_strided_slice %9 {offsets = [0, 128], sizes = [16, 128], strides = [1, 1]} : vector<16x256xf32> to vector<16x128xf32>
    %52 = vector.extract_strided_slice %51 {offsets = [0, 0], sizes = [16, 64], strides = [1, 1]} : vector<16x128xf32> to vector<16x64xf32>
    %53 = vector.extract_strided_slice %51 {offsets = [0, 64], sizes = [16, 64], strides = [1, 1]} : vector<16x128xf32> to vector<16x64xf32>
    %54 = arith.mulf %52, %10 : vector<16x64xf32>
    %55 = arith.mulf %53, %11 : vector<16x64xf32>
    %56 = arith.subf %54, %55 : vector<16x64xf32>
    %57 = arith.mulf %52, %11 : vector<16x64xf32>
    %58 = arith.mulf %53, %10 : vector<16x64xf32>
    %59 = arith.addf %57, %58 : vector<16x64xf32>
    %60 = tpu.concatenate %56, %59 in 1 : vector<16x64xf32>, vector<16x64xf32> -> vector<16x128xf32>
    %61 = arith.truncf %60 : vector<16x128xf32> to vector<16x128xbf16>
    %c1 = arith.constant 1 : index
    %c0_28 = arith.constant 0 : index
    %c0_29 = arith.constant 0 : index
    %62 = vector.load %arg21[%c1, %c0_28, %c0_29] : memref<2x16x128xbf16, #tpu.memory_space<vmem>>, vector<1x16x128xbf16>
    %63 = vector.shape_cast %62 : vector<1x16x128xbf16> to vector<16x128xbf16>
    %cst_30 = arith.constant dense<0.000000e+00> : vector<16x16xf32>
    %64 = tpu.matmul %61, %63, %cst_30 {dimension_numbers = #tpu.dot_dimension_numbers<[1], [1], [0], [0], [0, 0, 1, 0], [], []>} : vector<16x128xbf16>, vector<16x128xbf16>, vector<16x16xf32> -> vector<16x16xf32>
    %65 = vector.broadcast %13 : vector<1x16xf32> to vector<16x16xf32>
    %66 = arith.addf %64, %65 : vector<16x16xf32>
    %cst_31 = arith.constant dense<0xFF800000> : vector<16xf32>
    %67 = vector.multi_reduction <maximumf>, %66, %cst_31 [1] : vector<16x16xf32> to vector<16xf32>
    %68 = vector.shape_cast %67 : vector<16xf32> to vector<16x1xf32>
    %69 = vector.broadcast %68 : vector<16x1xf32> to vector<16x16xf32>
    %70 = arith.subf %66, %69 : vector<16x16xf32>
    %71 = math.exp %70 : vector<16x16xf32>
    %cst_32 = arith.constant dense<0.000000e+00> : vector<16xf32>
    %72 = vector.multi_reduction <add>, %71, %cst_32 [1] : vector<16x16xf32> to vector<16xf32>
    %73 = vector.shape_cast %72 : vector<16xf32> to vector<16x1xf32>
    %74 = vector.broadcast %73 : vector<16x1xf32> to vector<16x16xf32>
    %75 = arith.divf %71, %74 : vector<16x16xf32>
    %cst_33 = arith.constant 0.000000e+00 : f32
    %76 = vector.shape_cast %15 : vector<1x16xi1> to vector<1x16xi1>
    %77 = vector.broadcast %76 : vector<1x16xi1> to vector<16x16xi1>
    %78 = vector.broadcast %cst_33 : f32 to vector<16x16xf32>
    %79 = arith.select %77, %78, %75 : vector<16x16xi1>, vector<16x16xf32>
    %80 = arith.truncf %79 : vector<16x16xf32> to vector<16x16xbf16>
    %c1_34 = arith.constant 1 : index
    %c0_35 = arith.constant 0 : index
    %c0_36 = arith.constant 0 : index
    %81 = vector.load %arg22[%c1_34, %c0_35, %c0_36] : memref<2x16x128xbf16, #tpu.memory_space<vmem>>, vector<1x16x128xbf16>
    %82 = vector.shape_cast %81 : vector<1x16x128xbf16> to vector<16x128xbf16>
    %cst_37 = arith.constant dense<0.000000e+00> : vector<16x128xf32>
    %83 = tpu.matmul %80, %82, %cst_37 {dimension_numbers = #tpu.dot_dimension_numbers<[1], [0], [0], [1], [0, 0, 1, 1], [], []>} : vector<16x16xbf16>, vector<16x128xbf16>, vector<16x128xf32> -> vector<16x128xf32>
    %84 = arith.truncf %83 : vector<16x128xf32> to vector<16x128xbf16>
    %c0_38 = arith.constant 0 : index
    %c128 = arith.constant 128 : index
    %85 = vector.load %arg23[%c0_38, %c128] : memref<16x256xbf16, #tpu.memory_space<vmem>>, vector<16x128xbf16>
    tpu.vector_store %arg23[%c0_38, %c128], %84 {strides = array<i32>} : memref<16x256xbf16, #tpu.memory_space<vmem>>, vector<16x128xbf16>,
    %c0_39 = arith.constant 0 : index
    %c0_40 = arith.constant 0 : index
    %86 = vector.load %arg23[%c0_39, %c0_40] : memref<16x256xbf16, #tpu.memory_space<vmem>>, vector<16x256xbf16>
    %c0_41 = arith.constant 0 : index
    %c0_42 = arith.constant 0 : index
    %87 = vector.load %arg16[%c0_41, %c0_42] : memref<256x256xbf16, #tpu.memory_space<vmem>>, vector<256x256xbf16>
    %cst_43 = arith.constant dense<0.000000e+00> : vector<16x256xf32>
    %88 = tpu.matmul %86, %87, %cst_43 {dimension_numbers = #tpu.dot_dimension_numbers<[1], [0], [0], [1], [0, 0, 1, 1], [], []>} : vector<16x256xbf16>, vector<256x256xbf16>, vector<16x256xf32> -> vector<16x256xf32>
    %c0_44 = arith.constant 0 : index
    %c0_45 = arith.constant 0 : index
    %89 = vector.load %arg17[%c0_44, %c0_45] : memref<1x256xf32, #tpu.memory_space<vmem>>, vector<1x256xf32>
    %90 = vector.broadcast %89 : vector<1x256xf32> to vector<16x256xf32>
    %91 = arith.addf %88, %90 : vector<16x256xf32>
    %c0_46 = arith.constant 0 : index
    %c0_47 = arith.constant 0 : index
    %c0_48 = arith.constant 0 : index
    %92 = vector.load %arg18[%c0_46, %c0_47, %c0_48] : memref<1x16x256xf32, #tpu.memory_space<vmem>>, vector<1x16x256xf32>
    %93 = vector.shape_cast %92 : vector<1x16x256xf32> to vector<16x256xf32>
    %94 = vector.shape_cast %91 : vector<16x256xf32> to vector<1x16x256xf32>
    tpu.vector_store %arg18[%c0_46, %c0_47, %c0_48], %94 {strides = array<i32>} : memref<1x16x256xf32, #tpu.memory_space<vmem>>, vector<1x16x256xf32>,
    return
  }
  func.func @transform_0(%arg0: i32, %arg1: i32) -> (i32, i32, i32) {
    %c0_i32 = arith.constant 0 : i32
    %c0_i32_0 = arith.constant 0 : i32
    return %arg0, %arg1, %c0_i32 : i32, i32, i32
  }
  func.func @transform_1(%arg0: i32, %arg1: i32) -> (i32, i32, i32) {
    %c0_i32 = arith.constant 0 : i32
    %c0_i32_0 = arith.constant 0 : i32
    %c0_i32_1 = arith.constant 0 : i32
    return %arg0, %c0_i32, %c0_i32_0 : i32, i32, i32
  }
  func.func @transform_2(%arg0: i32, %arg1: i32) -> (i32, i32, i32) {
    %c0_i32 = arith.constant 0 : i32
    %c0_i32_0 = arith.constant 0 : i32
    %c0_i32_1 = arith.constant 0 : i32
    return %arg0, %c0_i32, %c0_i32_0 : i32, i32, i32
  }
  func.func @transform_3(%arg0: i32, %arg1: i32) -> (i32, i32, i32) {
    %c0_i32 = arith.constant 0 : i32
    %c0_i32_0 = arith.constant 0 : i32
    %c0_i32_1 = arith.constant 0 : i32
    return %arg0, %c0_i32, %c0_i32_0 : i32, i32, i32
  }
  func.func @transform_4(%arg0: i32, %arg1: i32) -> (i32, i32) {
    %c0_i32 = arith.constant 0 : i32
    %c0_i32_0 = arith.constant 0 : i32
    return %arg1, %c0_i32 : i32, i32
  }
  func.func @transform_5(%arg0: i32, %arg1: i32) -> (i32, i32) {
    %c0_i32 = arith.constant 0 : i32
    %c0_i32_0 = arith.constant 0 : i32
    return %arg1, %c0_i32 : i32, i32
  }
  func.func @transform_6(%arg0: i32, %arg1: i32) -> (i32, i32) {
    %c0_i32 = arith.constant 0 : i32
    %c0_i32_0 = arith.constant 0 : i32
    %c0_i32_1 = arith.constant 0 : i32
    return %c0_i32, %c0_i32_0 : i32, i32
  }
  func.func @transform_7(%arg0: i32, %arg1: i32) -> (i32, i32) {
    %c0_i32 = arith.constant 0 : i32
    %c0_i32_0 = arith.constant 0 : i32
    %c0_i32_1 = arith.constant 0 : i32
    return %c0_i32, %c0_i32_0 : i32, i32
  }
  func.func @transform_8(%arg0: i32, %arg1: i32) -> (i32, i32) {
    %c0_i32 = arith.constant 0 : i32
    %c0_i32_0 = arith.constant 0 : i32
    %c0_i32_1 = arith.constant 0 : i32
    return %c0_i32, %c0_i32_0 : i32, i32
  }
  func.func @transform_9(%arg0: i32, %arg1: i32) -> (i32, i32) {
    %c0_i32 = arith.constant 0 : i32
    %c0_i32_0 = arith.constant 0 : i32
    %c0_i32_1 = arith.constant 0 : i32
    return %c0_i32, %c0_i32_0 : i32, i32
  }
  func.func @transform_10(%arg0: i32, %arg1: i32) -> (i32, i32) {
    %c0_i32 = arith.constant 0 : i32
    %c0_i32_0 = arith.constant 0 : i32
    %c0_i32_1 = arith.constant 0 : i32
    return %c0_i32, %c0_i32_0 : i32, i32
  }
  func.func @transform_11(%arg0: i32, %arg1: i32) -> (i32, i32) {
    %c0_i32 = arith.constant 0 : i32
    %c0_i32_0 = arith.constant 0 : i32
    %c0_i32_1 = arith.constant 0 : i32
    return %c0_i32, %c0_i32_0 : i32, i32
  }
  func.func @transform_12(%arg0: i32, %arg1: i32) -> (i32, i32) {
    %c0_i32 = arith.constant 0 : i32
    %c0_i32_0 = arith.constant 0 : i32
    %c0_i32_1 = arith.constant 0 : i32
    return %c0_i32, %c0_i32_0 : i32, i32
  }
  func.func @transform_13(%arg0: i32, %arg1: i32) -> (i32, i32) {
    %c0_i32 = arith.constant 0 : i32
    %c0_i32_0 = arith.constant 0 : i32
    %c0_i32_1 = arith.constant 0 : i32
    return %c0_i32, %c0_i32_0 : i32, i32
  }
  func.func @transform_14(%arg0: i32, %arg1: i32) -> (i32, i32) {
    %c0_i32 = arith.constant 0 : i32
    %c0_i32_0 = arith.constant 0 : i32
    %c0_i32_1 = arith.constant 0 : i32
    return %c0_i32, %c0_i32_0 : i32, i32
  }
  func.func @transform_15(%arg0: i32, %arg1: i32) -> (i32, i32) {
    %c0_i32 = arith.constant 0 : i32
    %c0_i32_0 = arith.constant 0 : i32
    %c0_i32_1 = arith.constant 0 : i32
    return %c0_i32, %c0_i32_0 : i32, i32
  }
  func.func @transform_16(%arg0: i32, %arg1: i32) -> (i32, i32, i32) {
    %c0_i32 = arith.constant 0 : i32
    %c0_i32_0 = arith.constant 0 : i32
    return %arg0, %arg1, %c0_i32 : i32, i32, i32
  }
  func.func @transform_17(%arg0: i32, %arg1: i32) -> (i32, i32, i32) {
    %c0_i32 = arith.constant 0 : i32
    %c0_i32_0 = arith.constant 0 : i32
    %c0_i32_1 = arith.constant 0 : i32
    return %arg0, %c0_i32, %c0_i32_0 : i32, i32, i32
  }
  func.func @transform_18(%arg0: i32, %arg1: i32) -> (i32, i32, i32) {
    %c0_i32 = arith.constant 0 : i32
    %c0_i32_0 = arith.constant 0 : i32
    %c0_i32_1 = arith.constant 0 : i32
    return %arg0, %c0_i32, %c0_i32_0 : i32, i32, i32
  }
}

</mosaic_0001>

<llo_original>
// kernel: tpu_custom_call.1
$region0: #{tpu_custom_call.1}
  #allocation0 [shape = 'u32[]', space=smem, size = 0x4, offset = 0x4, fixed_abs, tag = 'smem constant byte address 0x4 - core index']
  #allocation1 [shape = 'u32[144,128]{1,0:T(1,128)}', space=vmem, size = 0x12000, scoped, tag = 'internal scratch']
  #allocation2 [shape = 'bf16[2,16,128]{2,1,0:T(16,128)(2,1)}', space=vmem, size = 0x2000, scoped, tag = 'scratch operand']
  #allocation3 [shape = 'bf16[2,16,128]{2,1,0:T(16,128)(2,1)}', space=vmem, size = 0x2000, scoped, tag = 'scratch operand']
  #allocation4 [shape = 'bf16[16,256]{1,0:T(16,128)(2,1)}', space=vmem, size = 0x2000, scoped, tag = 'scratch operand']
  %s0 = inlined_call_operand.hbm [shape: bf16[2,16,256], index: 0, kind: input, shape index: {}]
  %s1 = inlined_call_operand.hbm [shape: bf16[2,16,256], index: 1, kind: input, shape index: {}]
  %s2 = inlined_call_operand.hbm [shape: bf16[2,16,256], index: 2, kind: input, shape index: {}]
  %s3 = inlined_call_operand.hbm [shape: f32[2,1,16], index: 3, kind: input, shape index: {}]
  %s4 = inlined_call_operand.hbm [shape: f32[16,64], index: 4, kind: input, shape index: {}]
  %s5 = inlined_call_operand.hbm [shape: f32[16,64], index: 5, kind: input, shape index: {}]
  %s6 = inlined_call_operand.hbm [shape: f32[16,64], index: 6, kind: input, shape index: {}]
  %s7 = inlined_call_operand.hbm [shape: f32[16,64], index: 7, kind: input, shape index: {}]
  %s8 = inlined_call_operand.hbm [shape: bf16[256,256], index: 8, kind: input, shape index: {}]
  %s9 = inlined_call_operand.hbm [shape: f32[1,256], index: 9, kind: input, shape index: {}]
  %s10 = inlined_call_operand.hbm [shape: bf16[256,256], index: 10, kind: input, shape index: {}]
  %s11 = inlined_call_operand.hbm [shape: f32[1,256], index: 11, kind: input, shape index: {}]
  %s12 = inlined_call_operand.hbm [shape: bf16[256,256], index: 12, kind: input, shape index: {}]
  %s13 = inlined_call_operand.hbm [shape: f32[1,256], index: 13, kind: input, shape index: {}]
  %s14 = inlined_call_operand.hbm [shape: bf16[256,256], index: 14, kind: input, shape index: {}]
  %s15 = inlined_call_operand.hbm [shape: f32[1,256], index: 15, kind: input, shape index: {}]
  %s16 = inlined_call_operand.hbm [shape: f32[2,16,256], index: 16, kind: output, shape index: {0}]
  %s17 = inlined_call_operand.hbm [shape: f32[2,16,256], index: 17, kind: output, shape index: {1}]
  %s18 = inlined_call_operand.hbm [shape: f32[2,16,256], index: 18, kind: output, shape index: {2}]
  %19 = xla_tuple %s16, %s17, %s18
  %s20 = sld [smem:[#allocation0]]
  $region181: #{tpu_custom_call.1} parent=0
    _
  %s22 = ssub.s32 1, %s20
  %s23 = scalar_select 0, %s22, %s20
  $region1: #{tpu_custom_call.1} parent=0
    #allocation5 [shape = 'u8[16384]{0}', space=vmem, size = 0x4000, scoped, tag = 'input window, operand 0']
    #allocation6 [shape = 's32[2]{0}', space=sflag, size = 0x8, scoped, tag = 'scoped memory for tpu_custom_call.1']
    #allocation7 [shape = 's32[2]{0}', space=sflag, size = 0x8, scoped, tag = 'scoped memory for tpu_custom_call.1']
    #allocation8 [shape = 'u8[16384]{0}', space=vmem, size = 0x4000, scoped, tag = 'input window, operand 1']
    #allocation9 [shape = 's32[2]{0}', space=sflag, size = 0x8, scoped, tag = 'scoped memory for tpu_custom_call.1']
    #allocation10 [shape = 'u8[16384]{0}', space=vmem, size = 0x4000, scoped, tag = 'input window, operand 2']
    #allocation11 [shape = 'u8[1024]{0}', space=vmem, size = 0x400, scoped, tag = 'input window, operand 3']
    #allocation12 [shape = 's32[2]{0}', space=sflag, size = 0x8, scoped, tag = 'scoped memory for tpu_custom_call.1']
    #allocation13 [shape = 'u8[8192]{0}', space=vmem, size = 0x2000, scoped, tag = 'input window, operand 4, single buffered']
    #allocation14 [shape = 'u8[8192]{0}', space=vmem, size = 0x2000, scoped, tag = 'input window, operand 5, single buffered']
    #allocation15 [shape = 's32[1]{0}', space=sflag, size = 0x4, scoped, tag = 'scoped memory for tpu_custom_call.1']
    #allocation16 [shape = 'u8[8192]{0}', space=vmem, size = 0x2000, scoped, tag = 'input window, operand 6, single buffered']
    #allocation17 [shape = 'u8[8192]{0}', space=vmem, size = 0x2000, scoped, tag = 'input window, operand 7, single buffered']
    #allocation18 [shape = 's32[1]{0}', space=sflag, size = 0x4, scoped, tag = 'scoped memory for tpu_custom_call.1']
    #allocation19 [shape = 'u8[131072]{0}', space=vmem, size = 0x20000, scoped, tag = 'input window, operand 8, single buffered']
    #allocation20 [shape = 'u8[1024]{0}', space=vmem, size = 0x400, scoped, tag = 'input window, operand 9, single buffered']
    #allocation21 [shape = 's32[1]{0}', space=sflag, size = 0x4, scoped, tag = 'scoped memory for tpu_custom_call.1']
    #allocation22 [shape = 'u8[131072]{0}', space=vmem, size = 0x20000, scoped, tag = 'input window, operand 10, single buffered']
    #allocation23 [shape = 'u8[1024]{0}', space=vmem, size = 0x400, scoped, tag = 'input window, operand 11, single buffered']
    #allocation24 [shape = 's32[1]{0}', space=sflag, size = 0x4, scoped, tag = 'scoped memory for tpu_custom_call.1']
    #allocation25 [shape = 'u8[131072]{0}', space=vmem, size = 0x20000, scoped, tag = 'input window, operand 12, single buffered']
    #allocation26 [shape = 'u8[1024]{0}', space=vmem, size = 0x400, scoped, tag = 'input window, operand 13, single buffered']
    #allocation27 [shape = 's32[1]{0}', space=sflag, size = 0x4, scoped, tag = 'scoped memory for tpu_custom_call.1']
    #allocation28 [shape = 'u8[131072]{0}', space=vmem, size = 0x20000, scoped, tag = 'input window, operand 14, single buffered']
    #allocation29 [shape = 'u8[1024]{0}', space=vmem, size = 0x400, scoped, tag = 'input window, operand 15, single buffered']
    #allocation30 [shape = 's32[1]{0}', space=sflag, size = 0x4, scoped, tag = 'scoped memory for tpu_custom_call.1']
    #allocation31 [shape = 'u8[32768]{0}', space=vmem, size = 0x8000, scoped, tag = 'output window, operand 0']
    #allocation32 [shape = 'u8[32768]{0}', space=vmem, size = 0x8000, scoped, tag = 'output window, operand 1']
    #allocation33 [shape = 's32[2]{0}', space=sflag, size = 0x8, scoped, tag = 'scoped memory for tpu_custom_call.1']
    #allocation34 [shape = 'u8[32768]{0}', space=vmem, size = 0x8000, scoped, tag = 'output window, operand 2']
    %24 = vsyncpa [#allocation6], 0
    %s25 = scalar_lea.sflag [#allocation6], 1
    %26 = vsyncpa %s25, 0
    %27 = vsyncpa [#allocation9], 0
    %s28 = scalar_lea.sflag [#allocation9], 1
    %29 = vsyncpa %s28, 0
    %30 = vsyncpa [#allocation12], 0
    %s31 = scalar_lea.sflag [#allocation12], 1
    %32 = vsyncpa %s31, 0
    %33 = vsyncpa [#allocation15], 0
    %34 = vsyncpa [#allocation18], 0
    %35 = vsyncpa [#allocation21], 0
    %36 = vsyncpa [#allocation24], 0
    %37 = vsyncpa [#allocation27], 0
    %38 = vsyncpa [#allocation30], 0
    %39 = vsyncpa [#allocation7], 0
    %s40 = scalar_lea.sflag [#allocation7], 1
    %41 = vsyncpa %s40, 0
    %42 = vsyncpa [#allocation33], 0
    %s43 = scalar_lea.sflag [#allocation33], 1
    %44 = vsyncpa %s43, 0
    loop: start=0, step=1, limit=4
    $region2: #{tpu_custom_call.1} parent=1 // loop_pre_header
      _
    $region3: #{tpu_custom_call.1} parent=1 // loop_header
      %s46 = sphi 0, %s50
      %p47 = scmp.ge.s32.totalorder %s46, 4
      %s53 = sphi 0, %s65
      %s54 = sphi 0, %s61
      %s55 = sphi 0, %s53
      %s56 = sphi 0, %s54
      %s57 = sphi 0, %s55
      %s58 = sphi 0, %s56
      %s70 = sphi 0, %s72
      %s73 = sphi 0, %s70
      %s74 = sphi 0, %s73
      %s90 = sphi 0, %s74
      %s96 = sphi 0, %s98
      %s99 = sphi 0, %s96
      %s100 = sphi 0, %s99
      %s116 = sphi 0, %s100
      %s122 = sphi 0, %s124
      %s125 = sphi 0, %s122
      %s126 = sphi 0, %s125
      %s142 = sphi 0, %s126
      %s148 = sphi 0, %s150
      %s151 = sphi 0, %s148
      %s152 = sphi 0, %s151
      %s168 = sphi 0, %s152
      %s174 = sphi 0, %s176
      %s177 = sphi 0, %s174
      %s178 = sphi 0, %s177
      %s194 = sphi 0, %s178
      %s200 = sphi 0, %s202
      %s203 = sphi 0, %s200
      %s204 = sphi 0, %s203
      %s220 = sphi 0, %s204
      %s224 = sphi 0, %s224
      %s226 = sphi 0, %s224
      %s227 = sphi 0, %s226
      %s241 = sphi 0, %s227
      %s245 = sphi 0, %s245
      %s247 = sphi 0, %s245
      %s248 = sphi 0, %s247
      %s262 = sphi 0, %s248
      %s266 = sphi 0, %s266
      %s268 = sphi 0, %s266
      %s269 = sphi 0, %s268
      %s283 = sphi 0, %s269
      %s287 = sphi 0, %s287
      %s289 = sphi 0, %s287
      %s290 = sphi 0, %s289
      %s304 = sphi 0, %s290
      %s308 = sphi 0, %s308
      %s310 = sphi 0, %s308
      %s311 = sphi 0, %s310
      %s325 = sphi 0, %s311
      %s329 = sphi 0, %s329
      %s331 = sphi 0, %s329
      %s332 = sphi 0, %s331
      %s346 = sphi 0, %s332
      %s350 = sphi 0, %s350
      %s352 = sphi 0, %s350
      %s353 = sphi 0, %s352
      %s367 = sphi 0, %s353
      %s371 = sphi 0, %s371
      %s373 = sphi 0, %s371
      %s374 = sphi 0, %s373
      %s388 = sphi 0, %s374
      %s392 = sphi 0, %s392
      %s394 = sphi 0, %s392
      %s395 = sphi 0, %s394
      %s409 = sphi 0, %s395
      %s413 = sphi 0, %s413
      %s415 = sphi 0, %s413
      %s416 = sphi 0, %s415
      %s430 = sphi 0, %s416
      %s438 = sphi 0, %s440
      %s441 = sphi 0, %s438
      %s442 = sphi 0, %s441
      %s458 = sphi 0, %s442
      %s464 = sphi 0, %s466
      %s467 = sphi 0, %s464
      %s468 = sphi 0, %s467
      %s484 = sphi 0, %s468
      %s490 = sphi 0, %s492
      %s493 = sphi 0, %s490
      %s494 = sphi 0, %s493
      %s510 = sphi 0, %s494
    $region4: #{tpu_custom_call.1} parent=1 // loop_header_branch
      %49 = sbr.rel (%p47) target = $region8
    $region5: #{tpu_custom_call.1} parent=1 // loop_body
      %s51 = ssub.s32 %s46, 1
      %s52 = ssub.s32 %s46, 2
      %s59 = sadd.s32 1, %s54
      %p60 = scmp.ge.s32.totalorder %s59, 1
      %s61 = scalar_select %p60, 0, %s59
      %s62 = sadd.s32 1, %s53
      %s63 = scalar_select %p60, %s62, %s53
      %p64 = scmp.ge.s32.totalorder %s63, 2
      %s65 = scalar_select %p64, 0, %s63
      %s66 = ssub.s32 %s53, %s65
      %s67 = ssub.s32 %s54, %s61
      %s68 = sor.u32 %s66, %s67
      %p69 = scmp.eq.s32.totalorder %s68, 0
      %s71 = sadd.s32 %s70, 1
      %s72 = scalar_select %p69, %s70, %s71
      %p75 = pneg %p69
      %p76 = scmp.eq.s32.totalorder %s46, 1
      %p77 = por %p75, %p76
      %p78 = scmp.ne.s32.totalorder %s70, %s73
      %p79 = scmp.eq.s32.totalorder %s46, 0
      %p80 = por %p78, %p79
      %p81 = scmp.ne.s32.totalorder %s70, %s73
      %p82 = scmp.eq.s32.totalorder %s51, 1
      %p83 = por %p81, %p82
      %p84 = scmp.ne.s32.totalorder %s73, %s74
      %p85 = scmp.eq.s32.totalorder %s51, 0
      %p86 = por %p84, %p85
      %p87 = scmp.ne.s32.totalorder %s73, %s74
      %p88 = scmp.eq.s32.totalorder %s52, 1
      %p89 = por %p87, %p88
      %p91 = scmp.ne.s32.totalorder %s74, %s90
      %p92 = scmp.eq.s32.totalorder %s52, 0
      %p93 = por %p91, %p92
      %s94 = ssub.s32 %s53, %s65
      %p95 = scmp.eq.s32.totalorder %s94, 0
      %s97 = sadd.s32 %s96, 1
      %s98 = scalar_select %p95, %s96, %s97
      %p101 = pneg %p95
      %p102 = scmp.eq.s32.totalorder %s46, 1
      %p103 = por %p101, %p102
      %p104 = scmp.ne.s32.totalorder %s96, %s99
      %p105 = scmp.eq.s32.totalorder %s46, 0
      %p106 = por %p104, %p105
      %p107 = scmp.ne.s32.totalorder %s96, %s99
      %p108 = scmp.eq.s32.totalorder %s51, 1
      %p109 = por %p107, %p108
      %p110 = scmp.ne.s32.totalorder %s99, %s100
      %p111 = scmp.eq.s32.totalorder %s51, 0
      %p112 = por %p110, %p111
      %p113 = scmp.ne.s32.totalorder %s99, %s100
      %p114 = scmp.eq.s32.totalorder %s52, 1
      %p115 = por %p113, %p114
      %p117 = scmp.ne.s32.totalorder %s100, %s116
      %p118 = scmp.eq.s32.totalorder %s52, 0
      %p119 = por %p117, %p118
      %s120 = ssub.s32 %s53, %s65
      %p121 = scmp.eq.s32.totalorder %s120, 0
      %s123 = sadd.s32 %s122, 1
      %s124 = scalar_select %p121, %s122, %s123
      %p127 = pneg %p121
      %p128 = scmp.eq.s32.totalorder %s46, 1
      %p129 = por %p127, %p128
      %p130 = scmp.ne.s32.totalorder %s122, %s125
      %p131 = scmp.eq.s32.totalorder %s46, 0
      %p132 = por %p130, %p131
      %p133 = scmp.ne.s32.totalorder %s122, %s125
      %p134 = scmp.eq.s32.totalorder %s51, 1
      %p135 = por %p133, %p134
      %p136 = scmp.ne.s32.totalorder %s125, %s126
      %p137 = scmp.eq.s32.totalorder %s51, 0
      %p138 = por %p136, %p137
      %p139 = scmp.ne.s32.totalorder %s125, %s126
      %p140 = scmp.eq.s32.totalorder %s52, 1
      %p141 = por %p139, %p140
      %p143 = scmp.ne.s32.totalorder %s126, %s142
      %p144 = scmp.eq.s32.totalorder %s52, 0
      %p145 = por %p143, %p144
      %s146 = ssub.s32 %s53, %s65
      %p147 = scmp.eq.s32.totalorder %s146, 0
      %s149 = sadd.s32 %s148, 1
      %s150 = scalar_select %p147, %s148, %s149
      %p153 = pneg %p147
      %p154 = scmp.eq.s32.totalorder %s46, 1
      %p155 = por %p153, %p154
      %p156 = scmp.ne.s32.totalorder %s148, %s151
      %p157 = scmp.eq.s32.totalorder %s46, 0
      %p158 = por %p156, %p157
      %p159 = scmp.ne.s32.totalorder %s148, %s151
      %p160 = scmp.eq.s32.totalorder %s51, 1
      %p161 = por %p159, %p160
      %p162 = scmp.ne.s32.totalorder %s151, %s152
      %p163 = scmp.eq.s32.totalorder %s51, 0
      %p164 = por %p162, %p163
      %p165 = scmp.ne.s32.totalorder %s151, %s152
      %p166 = scmp.eq.s32.totalorder %s52, 1
      %p167 = por %p165, %p166
      %p169 = scmp.ne.s32.totalorder %s152, %s168
      %p170 = scmp.eq.s32.totalorder %s52, 0
      %p171 = por %p169, %p170
      %s172 = ssub.s32 %s54, %s61
      %p173 = scmp.eq.s32.totalorder %s172, 0
      %s175 = sadd.s32 %s174, 1
      %s176 = scalar_select %p173, %s174, %s175
      %p179 = pneg %p173
      %p180 = scmp.eq.s32.totalorder %s46, 1
      %p181 = por %p179, %p180
      %p182 = scmp.ne.s32.totalorder %s174, %s177
      %p183 = scmp.eq.s32.totalorder %s46, 0
      %p184 = por %p182, %p183
      %p185 = scmp.ne.s32.totalorder %s174, %s177
      %p186 = scmp.eq.s32.totalorder %s51, 1
      %p187 = por %p185, %p186
      %p188 = scmp.ne.s32.totalorder %s177, %s178
      %p189 = scmp.eq.s32.totalorder %s51, 0
      %p190 = por %p188, %p189
      %p191 = scmp.ne.s32.totalorder %s177, %s178
      %p192 = scmp.eq.s32.totalorder %s52, 1
      %p193 = por %p191, %p192
      %p195 = scmp.ne.s32.totalorder %s178, %s194
      %p196 = scmp.eq.s32.totalorder %s52, 0
      %p197 = por %p195, %p196
      %s198 = ssub.s32 %s54, %s61
      %p199 = scmp.eq.s32.totalorder %s198, 0
      %s201 = sadd.s32 %s200, 1
      %s202 = scalar_select %p199, %s200, %s201
      %p205 = pneg %p199
      %p206 = scmp.eq.s32.totalorder %s46, 1
      %p207 = por %p205, %p206
      %p208 = scmp.ne.s32.totalorder %s200, %s203
      %p209 = scmp.eq.s32.totalorder %s46, 0
      %p210 = por %p208, %p209
      %p211 = scmp.ne.s32.totalorder %s200, %s203
      %p212 = scmp.eq.s32.totalorder %s51, 1
      %p213 = por %p211, %p212
      %p214 = scmp.ne.s32.totalorder %s203, %s204
      %p215 = scmp.eq.s32.totalorder %s51, 0
      %p216 = por %p214, %p215
      %p217 = scmp.ne.s32.totalorder %s203, %s204
      %p218 = scmp.eq.s32.totalorder %s52, 1
      %p219 = por %p217, %p218
      %p221 = scmp.ne.s32.totalorder %s204, %s220
      %p222 = scmp.eq.s32.totalorder %s52, 0
      %p223 = por %p221, %p222
      %s225 = sadd.s32 %s224, 1
      %p228 = scmp.eq.s32.totalorder %s46, 1
      %p229 = scmp.ne.s32.totalorder %s224, %s226
      %p230 = scmp.eq.s32.totalorder %s46, 0
      %p231 = por %p229, %p230
      %p232 = scmp.ne.s32.totalorder %s224, %s226
      %p233 = scmp.eq.s32.totalorder %s51, 1
      %p234 = por %p232, %p233
      %p235 = scmp.ne.s32.totalorder %s226, %s227
      %p236 = scmp.eq.s32.totalorder %s51, 0
      %p237 = por %p235, %p236
      %p238 = scmp.ne.s32.totalorder %s226, %s227
      %p239 = scmp.eq.s32.totalorder %s52, 1
      %p240 = por %p238, %p239
      %p242 = scmp.ne.s32.totalorder %s227, %s241
      %p243 = scmp.eq.s32.totalorder %s52, 0
      %p244 = por %p242, %p243
      %s246 = sadd.s32 %s245, 1
      %p249 = scmp.eq.s32.totalorder %s46, 1
      %p250 = scmp.ne.s32.totalorder %s245, %s247
      %p251 = scmp.eq.s32.totalorder %s46, 0
      %p252 = por %p250, %p251
      %p253 = scmp.ne.s32.totalorder %s245, %s247
      %p254 = scmp.eq.s32.totalorder %s51, 1
      %p255 = por %p253, %p254
      %p256 = scmp.ne.s32.totalorder %s247, %s248
      %p257 = scmp.eq.s32.totalorder %s51, 0
      %p258 = por %p256, %p257
      %p259 = scmp.ne.s32.totalorder %s247, %s248
      %p260 = scmp.eq.s32.totalorder %s52, 1
      %p261 = por %p259, %p260
      %p263 = scmp.ne.s32.totalorder %s248, %s262
      %p264 = scmp.eq.s32.totalorder %s52, 0
      %p265 = por %p263, %p264
      %s267 = sadd.s32 %s266, 1
      %p270 = scmp.eq.s32.totalorder %s46, 1
      %p271 = scmp.ne.s32.totalorder %s266, %s268
      %p272 = scmp.eq.s32.totalorder %s46, 0
      %p273 = por %p271, %p272
      %p274 = scmp.ne.s32.totalorder %s266, %s268
      %p275 = scmp.eq.s32.totalorder %s51, 1
      %p276 = por %p274, %p275
      %p277 = scmp.ne.s32.totalorder %s268, %s269
      %p278 = scmp.eq.s32.totalorder %s51, 0
      %p279 = por %p277, %p278
      %p280 = scmp.ne.s32.totalorder %s268, %s269
      %p281 = scmp.eq.s32.totalorder %s52, 1
      %p282 = por %p280, %p281
      %p284 = scmp.ne.s32.totalorder %s269, %s283
      %p285 = scmp.eq.s32.totalorder %s52, 0
      %p286 = por %p284, %p285
      %s288 = sadd.s32 %s287, 1
      %p291 = scmp.eq.s32.totalorder %s46, 1
      %p292 = scmp.ne.s32.totalorder %s287, %s289
      %p293 = scmp.eq.s32.totalorder %s46, 0
      %p294 = por %p292, %p293
      %p295 = scmp.ne.s32.totalorder %s287, %s289
      %p296 = scmp.eq.s32.totalorder %s51, 1
      %p297 = por %p295, %p296
      %p298 = scmp.ne.s32.totalorder %s289, %s290
      %p299 = scmp.eq.s32.totalorder %s51, 0
      %p300 = por %p298, %p299
      %p301 = scmp.ne.s32.totalorder %s289, %s290
      %p302 = scmp.eq.s32.totalorder %s52, 1
      %p303 = por %p301, %p302
      %p305 = scmp.ne.s32.totalorder %s290, %s304
      %p306 = scmp.eq.s32.totalorder %s52, 0
      %p307 = por %p305, %p306
      %s309 = sadd.s32 %s308, 1
      %p312 = scmp.eq.s32.totalorder %s46, 1
      %p313 = scmp.ne.s32.totalorder %s308, %s310
      %p314 = scmp.eq.s32.totalorder %s46, 0
      %p315 = por %p313, %p314
      %p316 = scmp.ne.s32.totalorder %s308, %s310
      %p317 = scmp.eq.s32.totalorder %s51, 1
      %p318 = por %p316, %p317
      %p319 = scmp.ne.s32.totalorder %s310, %s311
      %p320 = scmp.eq.s32.totalorder %s51, 0
      %p321 = por %p319, %p320
      %p322 = scmp.ne.s32.totalorder %s310, %s311
      %p323 = scmp.eq.s32.totalorder %s52, 1
      %p324 = por %p322, %p323
      %p326 = scmp.ne.s32.totalorder %s311, %s325
      %p327 = scmp.eq.s32.totalorder %s52, 0
      %p328 = por %p326, %p327
      %s330 = sadd.s32 %s329, 1
      %p333 = scmp.eq.s32.totalorder %s46, 1
      %p334 = scmp.ne.s32.totalorder %s329, %s331
      %p335 = scmp.eq.s32.totalorder %s46, 0
      %p336 = por %p334, %p335
      %p337 = scmp.ne.s32.totalorder %s329, %s331
      %p338 = scmp.eq.s32.totalorder %s51, 1
      %p339 = por %p337, %p338
      %p340 = scmp.ne.s32.totalorder %s331, %s332
      %p341 = scmp.eq.s32.totalorder %s51, 0
      %p342 = por %p340, %p341
      %p343 = scmp.ne.s32.totalorder %s331, %s332
      %p344 = scmp.eq.s32.totalorder %s52, 1
      %p345 = por %p343, %p344
      %p347 = scmp.ne.s32.totalorder %s332, %s346
      %p348 = scmp.eq.s32.totalorder %s52, 0
      %p349 = por %p347, %p348
      %s351 = sadd.s32 %s350, 1
      %p354 = scmp.eq.s32.totalorder %s46, 1
      %p355 = scmp.ne.s32.totalorder %s350, %s352
      %p356 = scmp.eq.s32.totalorder %s46, 0
      %p357 = por %p355, %p356
      %p358 = scmp.ne.s32.totalorder %s350, %s352
      %p359 = scmp.eq.s32.totalorder %s51, 1
      %p360 = por %p358, %p359
      %p361 = scmp.ne.s32.totalorder %s352, %s353
      %p362 = scmp.eq.s32.totalorder %s51, 0
      %p363 = por %p361, %p362
      %p364 = scmp.ne.s32.totalorder %s352, %s353
      %p365 = scmp.eq.s32.totalorder %s52, 1
      %p366 = por %p364, %p365
      %p368 = scmp.ne.s32.totalorder %s353, %s367
      %p369 = scmp.eq.s32.totalorder %s52, 0
      %p370 = por %p368, %p369
      %s372 = sadd.s32 %s371, 1
      %p375 = scmp.eq.s32.totalorder %s46, 1
      %p376 = scmp.ne.s32.totalorder %s371, %s373
      %p377 = scmp.eq.s32.totalorder %s46, 0
      %p378 = por %p376, %p377
      %p379 = scmp.ne.s32.totalorder %s371, %s373
      %p380 = scmp.eq.s32.totalorder %s51, 1
      %p381 = por %p379, %p380
      %p382 = scmp.ne.s32.totalorder %s373, %s374
      %p383 = scmp.eq.s32.totalorder %s51, 0
      %p384 = por %p382, %p383
      %p385 = scmp.ne.s32.totalorder %s373, %s374
      %p386 = scmp.eq.s32.totalorder %s52, 1
      %p387 = por %p385, %p386
      %p389 = scmp.ne.s32.totalorder %s374, %s388
      %p390 = scmp.eq.s32.totalorder %s52, 0
      %p391 = por %p389, %p390
      %s393 = sadd.s32 %s392, 1
      %p396 = scmp.eq.s32.totalorder %s46, 1
      %p397 = scmp.ne.s32.totalorder %s392, %s394
      %p398 = scmp.eq.s32.totalorder %s46, 0
      %p399 = por %p397, %p398
      %p400 = scmp.ne.s32.totalorder %s392, %s394
      %p401 = scmp.eq.s32.totalorder %s51, 1
      %p402 = por %p400, %p401
      %p403 = scmp.ne.s32.totalorder %s394, %s395
      %p404 = scmp.eq.s32.totalorder %s51, 0
      %p405 = por %p403, %p404
      %p406 = scmp.ne.s32.totalorder %s394, %s395
      %p407 = scmp.eq.s32.totalorder %s52, 1
      %p408 = por %p406, %p407
      %p410 = scmp.ne.s32.totalorder %s395, %s409
      %p411 = scmp.eq.s32.totalorder %s52, 0
      %p412 = por %p410, %p411
      %s414 = sadd.s32 %s413, 1
      %p417 = scmp.eq.s32.totalorder %s46, 1
      %p418 = scmp.ne.s32.totalorder %s413, %s415
      %p419 = scmp.eq.s32.totalorder %s46, 0
      %p420 = por %p418, %p419
      %p421 = scmp.ne.s32.totalorder %s413, %s415
      %p422 = scmp.eq.s32.totalorder %s51, 1
      %p423 = por %p421, %p422
      %p424 = scmp.ne.s32.totalorder %s415, %s416
      %p425 = scmp.eq.s32.totalorder %s51, 0
      %p426 = por %p424, %p425
      %p427 = scmp.ne.s32.totalorder %s415, %s416
      %p428 = scmp.eq.s32.totalorder %s52, 1
      %p429 = por %p427, %p428
      %p431 = scmp.ne.s32.totalorder %s416, %s430
      %p432 = scmp.eq.s32.totalorder %s52, 0
      %p433 = por %p431, %p432
      %s434 = ssub.s32 %s53, %s65
      %s435 = ssub.s32 %s54, %s61
      %s436 = sor.u32 %s434, %s435
      %p437 = scmp.eq.s32.totalorder %s436, 0
      %s439 = sadd.s32 %s438, 1
      %s440 = scalar_select %p437, %s438, %s439
      %p443 = pneg %p437
      %p444 = scmp.eq.s32.totalorder %s46, 1
      %p445 = por %p443, %p444
      %p446 = scmp.ne.s32.totalorder %s438, %s441
      %p447 = scmp.eq.s32.totalorder %s46, 0
      %p448 = por %p446, %p447
      %p449 = scmp.ne.s32.totalorder %s438, %s441
      %p450 = scmp.eq.s32.totalorder %s51, 1
      %p451 = por %p449, %p450
      %p452 = scmp.ne.s32.totalorder %s441, %s442
      %p453 = scmp.eq.s32.totalorder %s51, 0
      %p454 = por %p452, %p453
      %p455 = scmp.ne.s32.totalorder %s441, %s442
      %p456 = scmp.eq.s32.totalorder %s52, 1
      %p457 = por %p455, %p456
      %p459 = scmp.ne.s32.totalorder %s442, %s458
      %p460 = scmp.eq.s32.totalorder %s52, 0
      %p461 = por %p459, %p460
      %s462 = ssub.s32 %s53, %s65
      %p463 = scmp.eq.s32.totalorder %s462, 0
      %s465 = sadd.s32 %s464, 1
      %s466 = scalar_select %p463, %s464, %s465
      %p469 = pneg %p463
      %p470 = scmp.eq.s32.totalorder %s46, 1
      %p471 = por %p469, %p470
      %p472 = scmp.ne.s32.totalorder %s464, %s467
      %p473 = scmp.eq.s32.totalorder %s46, 0
      %p474 = por %p472, %p473
      %p475 = scmp.ne.s32.totalorder %s464, %s467
      %p476 = scmp.eq.s32.totalorder %s51, 1
      %p477 = por %p475, %p476
      %p478 = scmp.ne.s32.totalorder %s467, %s468
      %p479 = scmp.eq.s32.totalorder %s51, 0
      %p480 = por %p478, %p479
      %p481 = scmp.ne.s32.totalorder %s467, %s468
      %p482 = scmp.eq.s32.totalorder %s52, 1
      %p483 = por %p481, %p482
      %p485 = scmp.ne.s32.totalorder %s468, %s484
      %p486 = scmp.eq.s32.totalorder %s52, 0
      %p487 = por %p485, %p486
      %s488 = ssub.s32 %s53, %s65
      %p489 = scmp.eq.s32.totalorder %s488, 0
      %s491 = sadd.s32 %s490, 1
      %s492 = scalar_select %p489, %s490, %s491
      %p495 = pneg %p489
      %p496 = scmp.eq.s32.totalorder %s46, 1
      %p497 = por %p495, %p496
      %p498 = scmp.ne.s32.totalorder %s490, %s493
      %p499 = scmp.eq.s32.totalorder %s46, 0
      %p500 = por %p498, %p499
      %p501 = scmp.ne.s32.totalorder %s490, %s493
      %p502 = scmp.eq.s32.totalorder %s51, 1
      %p503 = por %p501, %p502
      %p504 = scmp.ne.s32.totalorder %s493, %s494
      %p505 = scmp.eq.s32.totalorder %s51, 0
      %p506 = por %p504, %p505
      %p507 = scmp.ne.s32.totalorder %s493, %s494
      %p508 = scmp.eq.s32.totalorder %s52, 1
      %p509 = por %p507, %p508
      %p511 = scmp.ne.s32.totalorder %s494, %s510
      %p512 = scmp.eq.s32.totalorder %s52, 0
      %p513 = por %p511, %p512
      %p514 = scmp.le.s32.totalorder 1, %s46
      %p515 = scmp.lt.s32.totalorder %s46, 3
      %p516 = pnand %p514, %p515
      %p517 = pneg %p516
      // Predicated region
      $region9: #{tpu_custom_call.1} parent=5 // pred_check
        _
      $region10: #{tpu_custom_call.1} parent=5 // pred_check_branch
        %519 = sbr.rel (%p516) target = $region12
      $region11: #{tpu_custom_call.1} parent=5 // pred_region
        %s520 = ssub.s32 %s46, 1
        // Predicated region
        $region13: #{tpu_custom_call.1} parent=11 // pred_check
          %p521 = pneg %p190
        $region14: #{tpu_custom_call.1} parent=11 // pred_check_branch
          %523 = sbr.rel (%p521) target = $region16
        $region15: #{tpu_custom_call.1} parent=11 // pred_region
          %s524 = smul.u32 2, %s56
          %s526 = ssub.s32 256, 256
          %527 = vsyncadd [#allocation12], %s526
          %s528 = smul.addr %s524, 128
          %s529 = scalar_lea.hbm %s4, %s528
          %s530 = sshll.u32 [#allocation13], 4
          %s531 = int_to_ptr.vmem [resolvable:$true] %s530
          %536 = dma.hbm_to_vmem [thread:$0]  %s529, 256, %s531, [#allocation12], 128, 128, 8
        $region16: #{tpu_custom_call.1} parent=11 // pred_fallthru
          _
        // Predicated region
        $region17: #{tpu_custom_call.1} parent=11 // pred_check
          %p537 = pneg %p216
        $region18: #{tpu_custom_call.1} parent=11 // pred_check_branch
          %539 = sbr.rel (%p537) target = $region20
        $region19: #{tpu_custom_call.1} parent=11 // pred_region
          %s540 = smul.u32 2, %s56
          %s542 = ssub.s32 256, 256
          %543 = vsyncadd [#allocation15], %s542
          %s544 = smul.addr %s540, 128
          %s545 = scalar_lea.hbm %s5, %s544
          %s546 = sshll.u32 [#allocation14], 4
          %s547 = int_to_ptr.vmem [resolvable:$true] %s546
          %552 = dma.hbm_to_vmem [thread:$0]  %s545, 256, %s547, [#allocation15], 128, 128, 8
        $region20: #{tpu_custom_call.1} parent=11 // pred_fallthru
          _
        // Predicated region
        $region21: #{tpu_custom_call.1} parent=11 // pred_check
          %p553 = pneg %p237
        $region22: #{tpu_custom_call.1} parent=11 // pred_check_branch
          %555 = sbr.rel (%p553) target = $region24
        $region23: #{tpu_custom_call.1} parent=11 // pred_region
          %s557 = ssub.s32 256, 256
          %558 = vsyncadd [#allocation15], %s557
          %s559 = sshll.u32 [#allocation16], 4
          %s560 = int_to_ptr.vmem [resolvable:$true] %s559
          %565 = dma.hbm_to_vmem [thread:$0]  %s6, 256, %s560, [#allocation15], 128, 128, 8
        $region24: #{tpu_custom_call.1} parent=11 // pred_fallthru
          _
        // Predicated region
        $region25: #{tpu_custom_call.1} parent=11 // pred_check
          %p566 = pneg %p258
        $region26: #{tpu_custom_call.1} parent=11 // pred_check_branch
          %568 = sbr.rel (%p566) target = $region28
        $region27: #{tpu_custom_call.1} parent=11 // pred_region
          %s570 = ssub.s32 256, 256
          %571 = vsyncadd [#allocation18], %s570
          %s572 = sshll.u32 [#allocation17], 4
          %s573 = int_to_ptr.vmem [resolvable:$true] %s572
          %578 = dma.hbm_to_vmem [thread:$0]  %s7, 256, %s573, [#allocation18], 128, 128, 8
        $region28: #{tpu_custom_call.1} parent=11 // pred_fallthru
          _
        // Predicated region
        $region29: #{tpu_custom_call.1} parent=11 // pred_check
          %p579 = pneg %p279
        $region30: #{tpu_custom_call.1} parent=11 // pred_check_branch
          %581 = sbr.rel (%p579) target = $region32
        $region31: #{tpu_custom_call.1} parent=11 // pred_region
          %s583 = ssub.s32 4096, 4096
          %584 = vsyncadd [#allocation18], %s583
          %s585 = sshll.u32 [#allocation19], 4
          %s586 = int_to_ptr.vmem [resolvable:$true] %s585
          %591 = dma.hbm_to_vmem [thread:$0]  %s8, 4096, %s586, [#allocation18], 128, 128, 8
        $region32: #{tpu_custom_call.1} parent=11 // pred_fallthru
          _
        // Predicated region
        $region33: #{tpu_custom_call.1} parent=11 // pred_check
          %p592 = pneg %p300
        $region34: #{tpu_custom_call.1} parent=11 // pred_check_branch
          %594 = sbr.rel (%p592) target = $region36
        $region35: #{tpu_custom_call.1} parent=11 // pred_region
          %s596 = ssub.s32 32, 32
          %597 = vsyncadd [#allocation21], %s596
          %s599 = sshll.u32 [#allocation20], 4
          %s600 = int_to_ptr.vmem [resolvable:$true] %s599
          %602 = dma.hbm_to_vmem [thread:$0]  %s9, 32, %s600, [#allocation21]
        $region36: #{tpu_custom_call.1} parent=11 // pred_fallthru
          _
        // Predicated region
        $region37: #{tpu_custom_call.1} parent=11 // pred_check
          %p603 = pneg %p321
        $region38: #{tpu_custom_call.1} parent=11 // pred_check_branch
          %605 = sbr.rel (%p603) target = $region40
        $region39: #{tpu_custom_call.1} parent=11 // pred_region
          %s607 = ssub.s32 4096, 4096
          %608 = vsyncadd [#allocation21], %s607
          %s609 = sshll.u32 [#allocation22], 4
          %s610 = int_to_ptr.vmem [resolvable:$true] %s609
          %615 = dma.hbm_to_vmem [thread:$0]  %s10, 4096, %s610, [#allocation21], 128, 128, 8
        $region40: #{tpu_custom_call.1} parent=11 // pred_fallthru
          _
        // Predicated region
        $region41: #{tpu_custom_call.1} parent=11 // pred_check
          %p616 = pneg %p342
        $region42: #{tpu_custom_call.1} parent=11 // pred_check_branch
          %618 = sbr.rel (%p616) target = $region44
        $region43: #{tpu_custom_call.1} parent=11 // pred_region
          %s620 = ssub.s32 32, 32
          %621 = vsyncadd [#allocation24], %s620
          %s623 = sshll.u32 [#allocation23], 4
          %s624 = int_to_ptr.vmem [resolvable:$true] %s623
          %626 = dma.hbm_to_vmem [thread:$0]  %s11, 32, %s624, [#allocation24]
        $region44: #{tpu_custom_call.1} parent=11 // pred_fallthru
          _
        // Predicated region
        $region45: #{tpu_custom_call.1} parent=11 // pred_check
          %p627 = pneg %p363
        $region46: #{tpu_custom_call.1} parent=11 // pred_check_branch
          %629 = sbr.rel (%p627) target = $region48
        $region47: #{tpu_custom_call.1} parent=11 // pred_region
          %s631 = ssub.s32 4096, 4096
          %632 = vsyncadd [#allocation24], %s631
          %s633 = sshll.u32 [#allocation25], 4
          %s634 = int_to_ptr.vmem [resolvable:$true] %s633
          %639 = dma.hbm_to_vmem [thread:$0]  %s12, 4096, %s634, [#allocation24], 128, 128, 8
        $region48: #{tpu_custom_call.1} parent=11 // pred_fallthru
          _
        // Predicated region
        $region49: #{tpu_custom_call.1} parent=11 // pred_check
          %p640 = pneg %p384
        $region50: #{tpu_custom_call.1} parent=11 // pred_check_branch
          %642 = sbr.rel (%p640) target = $region52
        $region51: #{tpu_custom_call.1} parent=11 // pred_region
          %s644 = ssub.s32 32, 32
          %645 = vsyncadd [#allocation27], %s644
          %s647 = sshll.u32 [#allocation26], 4
          %s648 = int_to_ptr.vmem [resolvable:$true] %s647
          %650 = dma.hbm_to_vmem [thread:$0]  %s13, 32, %s648, [#allocation27]
        $region52: #{tpu_custom_call.1} parent=11 // pred_fallthru
          _
        // Predicated region
        $region53: #{tpu_custom_call.1} parent=11 // pred_check
          %p651 = pneg %p405
        $region54: #{tpu_custom_call.1} parent=11 // pred_check_branch
          %653 = sbr.rel (%p651) target = $region56
        $region55: #{tpu_custom_call.1} parent=11 // pred_region
          %s655 = ssub.s32 4096, 4096
          %656 = vsyncadd [#allocation27], %s655
          %s657 = sshll.u32 [#allocation28], 4
          %s658 = int_to_ptr.vmem [resolvable:$true] %s657
          %663 = dma.hbm_to_vmem [thread:$0]  %s14, 4096, %s658, [#allocation27], 128, 128, 8
        $region56: #{tpu_custom_call.1} parent=11 // pred_fallthru
          _
        // Predicated region
        $region57: #{tpu_custom_call.1} parent=11 // pred_check
          %p664 = pneg %p426
        $region58: #{tpu_custom_call.1} parent=11 // pred_check_branch
          %666 = sbr.rel (%p664) target = $region60
        $region59: #{tpu_custom_call.1} parent=11 // pred_region
          %s668 = ssub.s32 32, 32
          %669 = vsyncadd [#allocation30], %s668
          %s671 = sshll.u32 [#allocation29], 4
          %s672 = int_to_ptr.vmem [resolvable:$true] %s671
          %674 = dma.hbm_to_vmem [thread:$0]  %s15, 32, %s672, [#allocation30]
        $region60: #{tpu_custom_call.1} parent=11 // pred_fallthru
          _
      $region12: #{tpu_custom_call.1} parent=5 // pred_fallthru
        _
      %p675 = scmp.lt.s32.totalorder %s46, 2
      // Predicated region
      $region61: #{tpu_custom_call.1} parent=5 // pred_check
        %p676 = pneg %p675
      $region62: #{tpu_custom_call.1} parent=5 // pred_check_branch
        %678 = sbr.rel (%p676) target = $region64
      $region63: #{tpu_custom_call.1} parent=5 // pred_region
        // Predicated region
        $region65: #{tpu_custom_call.1} parent=63 // pred_check
          %p679 = pneg %p80
        $region66: #{tpu_custom_call.1} parent=63 // pred_check_branch
          %681 = sbr.rel (%p679) target = $region68
        $region67: #{tpu_custom_call.1} parent=63 // pred_region
          %s682 = sand.u32 %s70, 1
          %s683 = scalar_lea.sflag [#allocation6], %s682
          %s684 = sand.u32 %s70, 1
          %s685 = smul.addr %s684, 16
          %s686 = scalar_lea.vmem [#allocation5], %s685
          %s687 = smul.u32 2, %s54
          %s689 = ssub.s32 256, 256
          %690 = vsyncadd %s683, %s689
          %s691 = smul.addr %s687, 2
          %s692 = smul.addr %s53, 4
          %s693 = sadd.s32 %s691, %s692
          %s694 = smul.addr %s693, 64
          %s695 = scalar_lea.hbm %s0, %s694
          %s696 = sshll.u32 %s686, 4
          %s697 = int_to_ptr.vmem [resolvable:$true] %s696
          %702 = dma.hbm_to_vmem [thread:$0]  %s695, 256, %s697, %s683, 128, 128, 8
        $region68: #{tpu_custom_call.1} parent=63 // pred_fallthru
          _
        // Predicated region
        $region69: #{tpu_custom_call.1} parent=63 // pred_check
          %p703 = pneg %p106
        $region70: #{tpu_custom_call.1} parent=63 // pred_check_branch
          %705 = sbr.rel (%p703) target = $region72
        $region71: #{tpu_custom_call.1} parent=63 // pred_region
          %s706 = sand.u32 %s46, 1
          %s707 = scalar_lea.sflag [#allocation9], %s706
          %s708 = sand.u32 %s96, 1
          %s709 = smul.addr %s708, 16
          %s710 = scalar_lea.vmem [#allocation8], %s709
          %s712 = ssub.s32 256, 256
          %713 = vsyncadd %s707, %s712
          %s714 = smul.addr %s53, 4
          %s715 = smul.addr %s714, 64
          %s716 = scalar_lea.hbm %s1, %s715
          %s717 = sshll.u32 %s710, 4
          %s718 = int_to_ptr.vmem [resolvable:$true] %s717
          %723 = dma.hbm_to_vmem [thread:$0]  %s716, 256, %s718, %s707, 128, 128, 8
        $region72: #{tpu_custom_call.1} parent=63 // pred_fallthru
          _
        // Predicated region
        $region73: #{tpu_custom_call.1} parent=63 // pred_check
          %p724 = pneg %p132
        $region74: #{tpu_custom_call.1} parent=63 // pred_check_branch
          %726 = sbr.rel (%p724) target = $region76
        $region75: #{tpu_custom_call.1} parent=63 // pred_region
          %s727 = sand.u32 %s46, 1
          %s728 = scalar_lea.sflag [#allocation9], %s727
          %s729 = sand.u32 %s122, 1
          %s730 = smul.addr %s729, 16
          %s731 = scalar_lea.vmem [#allocation10], %s730
          %s733 = ssub.s32 256, 256
          %734 = vsyncadd %s728, %s733
          %s735 = smul.addr %s53, 4
          %s736 = smul.addr %s735, 64
          %s737 = scalar_lea.hbm %s2, %s736
          %s738 = sshll.u32 %s731, 4
          %s739 = int_to_ptr.vmem [resolvable:$true] %s738
          %744 = dma.hbm_to_vmem [thread:$0]  %s737, 256, %s739, %s728, 128, 128, 8
        $region76: #{tpu_custom_call.1} parent=63 // pred_fallthru
          _
        // Predicated region
        $region77: #{tpu_custom_call.1} parent=63 // pred_check
          %p745 = pneg %p158
        $region78: #{tpu_custom_call.1} parent=63 // pred_check_branch
          %747 = sbr.rel (%p745) target = $region80
        $region79: #{tpu_custom_call.1} parent=63 // pred_region
          %s748 = sand.u32 %s46, 1
          %s749 = scalar_lea.sflag [#allocation12], %s748
          %s750 = sand.u32 %s148, 1
          %s751 = scalar_lea.vmem [#allocation11], %s750
          %s753 = ssub.s32 16, 16
          %754 = vsyncadd %s749, %s753
          %s755 = smul.addr %s53, 16
          %s756 = scalar_lea.hbm %s3, %s755
          %s758 = sshll.u32 %s751, 4
          %s759 = int_to_ptr.vmem [resolvable:$true] %s758
          %761 = dma.hbm_to_vmem [thread:$0]  %s756, 16, %s759, %s749
        $region80: #{tpu_custom_call.1} parent=63 // pred_fallthru
          _
      $region64: #{tpu_custom_call.1} parent=5 // pred_fallthru
        _
      %p762 = scmp.le.s32.totalorder 1, %s46
      %p763 = scmp.lt.s32.totalorder %s46, 3
      %p764 = pnand %p762, %p763
      %p765 = pneg %p764
      // Predicated region
      $region81: #{tpu_custom_call.1} parent=5 // pred_check
        _
      $region82: #{tpu_custom_call.1} parent=5 // pred_check_branch
        %767 = sbr.rel (%p764) target = $region84
      $region83: #{tpu_custom_call.1} parent=5 // pred_region
        %s768 = ssub.s32 %s46, 1
        %s769 = sand.u32 %s73, 1
        %s770 = scalar_lea.sflag [#allocation6], %s769
        %s771 = sand.u32 %s73, 1
        %s772 = smul.addr %s771, 16
        %s773 = scalar_lea.vmem [#allocation5], %s772
        // Predicated region
        $region85: #{tpu_custom_call.1} parent=83 // pred_check
          %p774 = pneg %p86
        $region86: #{tpu_custom_call.1} parent=83 // pred_check_branch
          %776 = sbr.rel (%p774) target = $region88
        $region87: #{tpu_custom_call.1} parent=83 // pred_region
          %777 = dma.done %s770, 256
        $region88: #{tpu_custom_call.1} parent=83 // pred_fallthru
          _
        %s778 = sand.u32 %s51, 1
        %s779 = scalar_lea.sflag [#allocation9], %s778
        %s780 = sand.u32 %s99, 1
        %s781 = smul.addr %s780, 16
        %s782 = scalar_lea.vmem [#allocation8], %s781
        // Predicated region
        $region89: #{tpu_custom_call.1} parent=83 // pred_check
          %p783 = pneg %p112
        $region90: #{tpu_custom_call.1} parent=83 // pred_check_branch
          %785 = sbr.rel (%p783) target = $region92
        $region91: #{tpu_custom_call.1} parent=83 // pred_region
          %786 = dma.done %s779, 256
        $region92: #{tpu_custom_call.1} parent=83 // pred_fallthru
          _
        %s787 = sand.u32 %s51, 1
        %s788 = scalar_lea.sflag [#allocation9], %s787
        %s789 = sand.u32 %s125, 1
        %s790 = smul.addr %s789, 16
        %s791 = scalar_lea.vmem [#allocation10], %s790
        // Predicated region
        $region93: #{tpu_custom_call.1} parent=83 // pred_check
          %p792 = pneg %p138
        $region94: #{tpu_custom_call.1} parent=83 // pred_check_branch
          %794 = sbr.rel (%p792) target = $region96
        $region95: #{tpu_custom_call.1} parent=83 // pred_region
          %795 = dma.done %s788, 256
        $region96: #{tpu_custom_call.1} parent=83 // pred_fallthru
          _
        %s796 = sand.u32 %s51, 1
        %s797 = scalar_lea.sflag [#allocation12], %s796
        %s798 = sand.u32 %s151, 1
        %s799 = scalar_lea.vmem [#allocation11], %s798
        // Predicated region
        $region97: #{tpu_custom_call.1} parent=83 // pred_check
          %p800 = pneg %p164
        $region98: #{tpu_custom_call.1} parent=83 // pred_check_branch
          %802 = sbr.rel (%p800) target = $region100
        $region99: #{tpu_custom_call.1} parent=83 // pred_region
          %803 = dma.done %s797, 16
        $region100: #{tpu_custom_call.1} parent=83 // pred_fallthru
          _
        // Predicated region
        $region101: #{tpu_custom_call.1} parent=83 // pred_check
          %p804 = pneg %p190
        $region102: #{tpu_custom_call.1} parent=83 // pred_check_branch
          %806 = sbr.rel (%p804) target = $region104
        $region103: #{tpu_custom_call.1} parent=83 // pred_region
          %807 = dma.done [#allocation12], 256
        $region104: #{tpu_custom_call.1} parent=83 // pred_fallthru
          _
        // Predicated region
        $region105: #{tpu_custom_call.1} parent=83 // pred_check
          %p808 = pneg %p216
        $region106: #{tpu_custom_call.1} parent=83 // pred_check_branch
          %810 = sbr.rel (%p808) target = $region108
        $region107: #{tpu_custom_call.1} parent=83 // pred_region
          %811 = dma.done [#allocation15], 256
        $region108: #{tpu_custom_call.1} parent=83 // pred_fallthru
          _
        // Predicated region
        $region109: #{tpu_custom_call.1} parent=83 // pred_check
          %p812 = pneg %p237
        $region110: #{tpu_custom_call.1} parent=83 // pred_check_branch
          %814 = sbr.rel (%p812) target = $region112
        $region111: #{tpu_custom_call.1} parent=83 // pred_region
          %815 = dma.done [#allocation15], 256
        $region112: #{tpu_custom_call.1} parent=83 // pred_fallthru
          _
        // Predicated region
        $region113: #{tpu_custom_call.1} parent=83 // pred_check
          %p816 = pneg %p258
        $region114: #{tpu_custom_call.1} parent=83 // pred_check_branch
          %818 = sbr.rel (%p816) target = $region116
        $region115: #{tpu_custom_call.1} parent=83 // pred_region
          %819 = dma.done [#allocation18], 256
        $region116: #{tpu_custom_call.1} parent=83 // pred_fallthru
          _
        // Predicated region
        $region117: #{tpu_custom_call.1} parent=83 // pred_check
          %p820 = pneg %p279
        $region118: #{tpu_custom_call.1} parent=83 // pred_check_branch
          %822 = sbr.rel (%p820) target = $region120
        $region119: #{tpu_custom_call.1} parent=83 // pred_region
          %823 = dma.done [#allocation18], 4096
        $region120: #{tpu_custom_call.1} parent=83 // pred_fallthru
          _
        // Predicated region
        $region121: #{tpu_custom_call.1} parent=83 // pred_check
          %p824 = pneg %p300
        $region122: #{tpu_custom_call.1} parent=83 // pred_check_branch
          %826 = sbr.rel (%p824) target = $region124
        $region123: #{tpu_custom_call.1} parent=83 // pred_region
          %827 = dma.done [#allocation21], 32
        $region124: #{tpu_custom_call.1} parent=83 // pred_fallthru
          _
        // Predicated region
        $region125: #{tpu_custom_call.1} parent=83 // pred_check
          %p828 = pneg %p321
        $region126: #{tpu_custom_call.1} parent=83 // pred_check_branch
          %830 = sbr.rel (%p828) target = $region128
        $region127: #{tpu_custom_call.1} parent=83 // pred_region
          %831 = dma.done [#allocation21], 4096
        $region128: #{tpu_custom_call.1} parent=83 // pred_fallthru
          _
        // Predicated region
        $region129: #{tpu_custom_call.1} parent=83 // pred_check
          %p832 = pneg %p342
        $region130: #{tpu_custom_call.1} parent=83 // pred_check_branch
          %834 = sbr.rel (%p832) target = $region132
        $region131: #{tpu_custom_call.1} parent=83 // pred_region
          %835 = dma.done [#allocation24], 32
        $region132: #{tpu_custom_call.1} parent=83 // pred_fallthru
          _
        // Predicated region
        $region133: #{tpu_custom_call.1} parent=83 // pred_check
          %p836 = pneg %p363
        $region134: #{tpu_custom_call.1} parent=83 // pred_check_branch
          %838 = sbr.rel (%p836) target = $region136
        $region135: #{tpu_custom_call.1} parent=83 // pred_region
          %839 = dma.done [#allocation24], 4096
        $region136: #{tpu_custom_call.1} parent=83 // pred_fallthru
          _
        // Predicated region
        $region137: #{tpu_custom_call.1} parent=83 // pred_check
          %p840 = pneg %p384
        $region138: #{tpu_custom_call.1} parent=83 // pred_check_branch
          %842 = sbr.rel (%p840) target = $region140
        $region139: #{tpu_custom_call.1} parent=83 // pred_region
          %843 = dma.done [#allocation27], 32
        $region140: #{tpu_custom_call.1} parent=83 // pred_fallthru
          _
        // Predicated region
        $region141: #{tpu_custom_call.1} parent=83 // pred_check
          %p844 = pneg %p405
        $region142: #{tpu_custom_call.1} parent=83 // pred_check_branch
          %846 = sbr.rel (%p844) target = $region144
        $region143: #{tpu_custom_call.1} parent=83 // pred_region
          %847 = dma.done [#allocation27], 4096
        $region144: #{tpu_custom_call.1} parent=83 // pred_fallthru
          _
        // Predicated region
        $region145: #{tpu_custom_call.1} parent=83 // pred_check
          %p848 = pneg %p426
        $region146: #{tpu_custom_call.1} parent=83 // pred_check_branch
          %850 = sbr.rel (%p848) target = $region148
        $region147: #{tpu_custom_call.1} parent=83 // pred_region
          %851 = dma.done [#allocation30], 32
        $region148: #{tpu_custom_call.1} parent=83 // pred_fallthru
          _
        %s852 = sand.u32 %s73, 1
        %s853 = scalar_lea.sflag [#allocation6], %s852
        %s854 = sand.u32 %s73, 1
        %s855 = smul.addr %s854, 16
        %s856 = scalar_lea.vmem [#allocation5], %s855
        %p857 = pneg %p86
        %p858 = pneg %p83
        %s859 = sand.u32 %s51, 1
        %s860 = scalar_lea.sflag [#allocation9], %s859
        %s861 = sand.u32 %s99, 1
        %s862 = smul.addr %s861, 16
        %s863 = scalar_lea.vmem [#allocation8], %s862
        %p864 = pneg %p112
        %p865 = pneg %p109
        %s866 = sand.u32 %s51, 1
        %s867 = scalar_lea.sflag [#allocation9], %s866
        %s868 = sand.u32 %s125, 1
        %s869 = smul.addr %s868, 16
        %s870 = scalar_lea.vmem [#allocation10], %s869
        %p871 = pneg %p138
        %p872 = pneg %p135
        %s873 = sand.u32 %s51, 1
        %s874 = scalar_lea.sflag [#allocation12], %s873
        %s875 = sand.u32 %s151, 1
        %s876 = scalar_lea.vmem [#allocation11], %s875
        %p877 = pneg %p164
        %p878 = pneg %p161
        %p879 = pneg %p190
        %p880 = pneg %p187
        %p881 = pneg %p216
        %p882 = pneg %p213
        %p883 = pneg %p237
        %p884 = pneg %p234
        %p885 = pneg %p258
        %p886 = pneg %p255
        %p887 = pneg %p279
        %p888 = pneg %p276
        %p889 = pneg %p300
        %p890 = pneg %p297
        %p891 = pneg %p321
        %p892 = pneg %p318
        %p893 = pneg %p342
        %p894 = pneg %p339
        %p895 = pneg %p363
        %p896 = pneg %p360
        %p897 = pneg %p384
        %p898 = pneg %p381
        %p899 = pneg %p405
        %p900 = pneg %p402
        %p901 = pneg %p426
        %p902 = pneg %p423
        %p903 = pneg %p454
        %p904 = pneg %p451
        %s905 = sand.u32 %s441, 1
        %s906 = scalar_lea.sflag [#allocation7], %s905
        %s907 = sand.u32 %s441, 1
        %s908 = smul.addr %s907, 32
        %s909 = scalar_lea.vmem [#allocation31], %s908
        %p910 = pneg %p480
        %p911 = pneg %p477
        %s912 = sand.u32 %s51, 1
        %s913 = scalar_lea.sflag [#allocation33], %s912
        %s914 = sand.u32 %s467, 1
        %s915 = smul.addr %s914, 32
        %s916 = scalar_lea.vmem [#allocation32], %s915
        %p917 = pneg %p506
        %p918 = pneg %p503
        %s919 = sand.u32 %s51, 1
        %s920 = scalar_lea.sflag [#allocation33], %s919
        %s921 = sand.u32 %s493, 1
        %s922 = smul.addr %s921, 32
        %s923 = scalar_lea.vmem [#allocation34], %s922
        %s924 = smul.u32 2, %s56
        %s925 = smul.u32 2, %s56
        %s926 = smul.u32 2, %s56
        %s927 = smul.u32 2, %s56
        %p929 = scmp.eq.s32.totalorder %s56, 0
        // Predicated region
        $region149: #{tpu_custom_call.1} parent=83 // pred_check
          %p930 = pneg %p929
        $region150: #{tpu_custom_call.1} parent=83 // pred_check_branch
          %932 = sbr.rel (%p930) target = $region152
        $region151: #{tpu_custom_call.1} parent=83 // pred_region
          %v933 = vld [vmem:[%s782] sm:$0xff]
          %v934 = vld [vmem:[%s782 + $0x8] sm:$0xff]
          %v935 = vld [vmem:[#allocation22] sm:$0xff]
          %v936 = vld [vmem:[#allocation22 + $0x8] sm:$0xff]
          %v937 = vld [vmem:[#allocation22 + $0x10] sm:$0xff]
          %v938 = vld [vmem:[#allocation22 + $0x18] sm:$0xff]
          %v939 = vld [vmem:[#allocation22 + $0x20] sm:$0xff]
          %v940 = vld [vmem:[#allocation22 + $0x28] sm:$0xff]
          %v941 = vld [vmem:[#allocation22 + $0x30] sm:$0xff]
          %v942 = vld [vmem:[#allocation22 + $0x38] sm:$0xff]
          %v943 = vld [vmem:[#allocation22 + $0x40] sm:$0xff]
          %v944 = vld [vmem:[#allocation22 + $0x48] sm:$0xff]
          %v945 = vld [vmem:[#allocation22 + $0x50] sm:$0xff]
          %v946 = vld [vmem:[#allocation22 + $0x58] sm:$0xff]
          %v947 = vld [vmem:[#allocation22 + $0x60] sm:$0xff]
          %v948 = vld [vmem:[#allocation22 + $0x68] sm:$0xff]
          %v949 = vld [vmem:[#allocation22 + $0x70] sm:$0xff]
          %v950 = vld [vmem:[#allocation22 + $0x78] sm:$0xff]
          %v951 = vld [vmem:[#allocation22 + $0x80] sm:$0xff]
          %v952 = vld [vmem:[#allocation22 + $0x88] sm:$0xff]
          %v953 = vld [vmem:[#allocation22 + $0x90] sm:$0xff]
          %v954 = vld [vmem:[#allocation22 + $0x98] sm:$0xff]
          %v955 = vld [vmem:[#allocation22 + $0xa0] sm:$0xff]
          %v956 = vld [vmem:[#allocation22 + $0xa8] sm:$0xff]
          %v957 = vld [vmem:[#allocation22 + $0xb0] sm:$0xff]
          %v958 = vld [vmem:[#allocation22 + $0xb8] sm:$0xff]
          %v959 = vld [vmem:[#allocation22 + $0xc0] sm:$0xff]
          %v960 = vld [vmem:[#allocation22 + $0xc8] sm:$0xff]
          %v961 = vld [vmem:[#allocation22 + $0xd0] sm:$0xff]
          %v962 = vld [vmem:[#allocation22 + $0xd8] sm:$0xff]
          %v963 = vld [vmem:[#allocation22 + $0xe0] sm:$0xff]
          %v964 = vld [vmem:[#allocation22 + $0xe8] sm:$0xff]
          %v965 = vld [vmem:[#allocation22 + $0xf0] sm:$0xff]
          %v966 = vld [vmem:[#allocation22 + $0xf8] sm:$0xff]
          %v967 = vld [vmem:[#allocation23] sm:$0x3]
          %v969 = vlaneseq
          %v970 = vshrl.u32 %v969, 7
          %v971 = vsub.s32 0, %v970
          %v972 = vrot.slane %v967, %v971
          %v973 = vlaneseq
          %v974 = vshrl.u32 %v973, 7
          %v975 = vsub.s32 1, %v974
          %v976 = vrot.slane %v967, %v975
          %v981 = vunpack.c.l.b16 %v933
          %v982 = vunpack.c.h.b16 %v933
          %v983 = vunpack.c.l.b16 %v934
          %v984 = vunpack.c.h.b16 %v934
          %v985 = vpack.c.b16 %v983, %v981
          %v986 = vpack.c.b16 %v984, %v982
          %v1021 = vunpack.c.l.b16 %v935
          %v1022 = vunpack.c.h.b16 %v935
          %v1023 = vunpack.c.l.b16 %v936
          %v1024 = vunpack.c.h.b16 %v936
          %v1025 = vunpack.c.l.b16 %v937
          %v1026 = vunpack.c.h.b16 %v937
          %v1027 = vunpack.c.l.b16 %v938
          %v1028 = vunpack.c.h.b16 %v938
          %v1029 = vunpack.c.l.b16 %v939
          %v1030 = vunpack.c.h.b16 %v939
          %v1031 = vunpack.c.l.b16 %v940
          %v1032 = vunpack.c.h.b16 %v940
          %v1033 = vunpack.c.l.b16 %v941
          %v1034 = vunpack.c.h.b16 %v941
          %v1035 = vunpack.c.l.b16 %v942
          %v1036 = vunpack.c.h.b16 %v942
          %v1037 = vunpack.c.l.b16 %v943
          %v1038 = vunpack.c.h.b16 %v943
          %v1039 = vunpack.c.l.b16 %v944
          %v1040 = vunpack.c.h.b16 %v944
          %v1041 = vunpack.c.l.b16 %v945
          %v1042 = vunpack.c.h.b16 %v945
          %v1043 = vunpack.c.l.b16 %v946
          %v1044 = vunpack.c.h.b16 %v946
          %v1045 = vunpack.c.l.b16 %v947
          %v1046 = vunpack.c.h.b16 %v947
          %v1047 = vunpack.c.l.b16 %v948
          %v1048 = vunpack.c.h.b16 %v948
          %v1049 = vunpack.c.l.b16 %v949
          %v1050 = vunpack.c.h.b16 %v949
          %v1051 = vunpack.c.l.b16 %v950
          %v1052 = vunpack.c.h.b16 %v950
          %v1053 = vunpack.c.l.b16 %v951
          %v1054 = vunpack.c.h.b16 %v951
          %v1055 = vunpack.c.l.b16 %v952
          %v1056 = vunpack.c.h.b16 %v952
          %v1057 = vunpack.c.l.b16 %v953
          %v1058 = vunpack.c.h.b16 %v953
          %v1059 = vunpack.c.l.b16 %v954
          %v1060 = vunpack.c.h.b16 %v954
          %v1061 = vunpack.c.l.b16 %v955
          %v1062 = vunpack.c.h.b16 %v955
          %v1063 = vunpack.c.l.b16 %v956
          %v1064 = vunpack.c.h.b16 %v956
          %v1065 = vunpack.c.l.b16 %v957
          %v1066 = vunpack.c.h.b16 %v957
          %v1067 = vunpack.c.l.b16 %v958
          %v1068 = vunpack.c.h.b16 %v958
          %v1069 = vunpack.c.l.b16 %v959
          %v1070 = vunpack.c.h.b16 %v959
          %v1071 = vunpack.c.l.b16 %v960
          %v1072 = vunpack.c.h.b16 %v960
          %v1073 = vunpack.c.l.b16 %v961
          %v1074 = vunpack.c.h.b16 %v961
          %v1075 = vunpack.c.l.b16 %v962
          %v1076 = vunpack.c.h.b16 %v962
          %v1077 = vunpack.c.l.b16 %v963
          %v1078 = vunpack.c.h.b16 %v963
          %v1079 = vunpack.c.l.b16 %v964
          %v1080 = vunpack.c.h.b16 %v964
          %v1081 = vunpack.c.l.b16 %v965
          %v1082 = vunpack.c.h.b16 %v965
          %v1083 = vunpack.c.l.b16 %v966
          %v1084 = vunpack.c.h.b16 %v966
          %v1085 = vpack.c.b16 %v1023, %v1021
          %v1086 = vpack.c.b16 %v1024, %v1022
          %v1087 = vpack.c.b16 %v1027, %v1025
          %v1088 = vpack.c.b16 %v1028, %v1026
          %v1089 = vpack.c.b16 %v1031, %v1029
          %v1090 = vpack.c.b16 %v1032, %v1030
          %v1091 = vpack.c.b16 %v1035, %v1033
          %v1092 = vpack.c.b16 %v1036, %v1034
          %v1093 = vpack.c.b16 %v1039, %v1037
          %v1094 = vpack.c.b16 %v1040, %v1038
          %v1095 = vpack.c.b16 %v1043, %v1041
          %v1096 = vpack.c.b16 %v1044, %v1042
          %v1097 = vpack.c.b16 %v1047, %v1045
          %v1098 = vpack.c.b16 %v1048, %v1046
          %v1099 = vpack.c.b16 %v1051, %v1049
          %v1100 = vpack.c.b16 %v1052, %v1050
          %v1101 = vpack.c.b16 %v1055, %v1053
          %v1102 = vpack.c.b16 %v1056, %v1054
          %v1103 = vpack.c.b16 %v1059, %v1057
          %v1104 = vpack.c.b16 %v1060, %v1058
          %v1105 = vpack.c.b16 %v1063, %v1061
          %v1106 = vpack.c.b16 %v1064, %v1062
          %v1107 = vpack.c.b16 %v1067, %v1065
          %v1108 = vpack.c.b16 %v1068, %v1066
          %v1109 = vpack.c.b16 %v1071, %v1069
          %v1110 = vpack.c.b16 %v1072, %v1070
          %v1111 = vpack.c.b16 %v1075, %v1073
          %v1112 = vpack.c.b16 %v1076, %v1074
          %v1113 = vpack.c.b16 %v1079, %v1077
          %v1114 = vpack.c.b16 %v1080, %v1078
          %v1115 = vpack.c.b16 %v1083, %v1081
          %v1116 = vpack.c.b16 %v1084, %v1082
          %1149 = vmatprep.subr.bf16.mxu0 %v1086
          %1150 = vmatpush1.bf16.msra.mxu0 %v1085
          %1151 = vmatprep.subr.bf16.mxu0 %v1088
          %1152 = vmatpush1.bf16.msra.mxu0 %v1087
          %1153 = vmatprep.subr.bf16.mxu0 %v1090
          %1154 = vmatpush1.bf16.msra.mxu0 %v1089
          %1155 = vmatprep.subr.bf16.mxu0 %v1092
          %1156 = vmatpush1.bf16.msra.mxu0 %v1091
          %1157 = vmatprep.subr.bf16.mxu0 %v1094
          %1158 = vmatpush1.bf16.msra.mxu0 %v1093
          %1159 = vmatprep.subr.bf16.mxu0 %v1096
          %1160 = vmatpush1.bf16.msra.mxu0 %v1095
          %1161 = vmatprep.subr.bf16.mxu0 %v1098
          %1162 = vmatpush1.bf16.msra.mxu0 %v1097
          %1163 = vmatprep.subr.bf16.mxu0 %v1100
          %1164 = vmatpush1.bf16.msra.mxu0 %v1099
          %1165 = vmatprep.subr.bf16.mxu0 %v1102
          %1166 = vmatpush1.bf16.msra.mxu0 %v1101
          %1167 = vmatprep.subr.bf16.mxu0 %v1104
          %1168 = vmatpush1.bf16.msra.mxu0 %v1103
          %1169 = vmatprep.subr.bf16.mxu0 %v1106
          %1170 = vmatpush1.bf16.msra.mxu0 %v1105
          %1171 = vmatprep.subr.bf16.mxu0 %v1108
          %1172 = vmatpush1.bf16.msra.mxu0 %v1107
          %1173 = vmatprep.subr.bf16.mxu0 %v1110
          %1174 = vmatpush1.bf16.msra.mxu0 %v1109
          %1175 = vmatprep.subr.bf16.mxu0 %v1112
          %1176 = vmatpush1.bf16.msra.mxu0 %v1111
          %1177 = vmatprep.subr.bf16.mxu0 %v1114
          %1178 = vmatpush1.bf16.msra.mxu0 %v1113
          %1179 = vmatprep.subr.bf16.mxu0 %v1116
          %1180 = vmatpush1.bf16.msra.mxu0 %v1115
          %1181 = vmatprep.mubr.bf16.mxu0 %v986
          %1182 = vmatmul.mubr.bf16.gmra.mrb[0].mxu0 %v985
          %v1183 = vpop.f32.mrb[0].mxu0
          %v1184 = vadd.f32 %v972, %v1183
          %v1185 = vpop.f32.mrb[0].mxu0
          %v1186 = vadd.f32 %v976, %v1185
          %v1187 = vpop.f32.mrb[0].mxu0
          %v1188 = vadd.f32 %v972, %v1187
          %v1189 = vpop.f32.mrb[0].mxu0
          %v1190 = vadd.f32 %v976, %v1189
          %1191 = vdwg.mxu0
          %v1192 = vld [vmem:[%s791] sm:$0xff]
          %v1193 = vld [vmem:[%s791 + $0x8] sm:$0xff]
          %v1194 = vld [vmem:[#allocation25] sm:$0xff]
          %v1195 = vld [vmem:[#allocation25 + $0x8] sm:$0xff]
          %v1196 = vld [vmem:[#allocation25 + $0x10] sm:$0xff]
          %v1197 = vld [vmem:[#allocation25 + $0x18] sm:$0xff]
          %v1198 = vld [vmem:[#allocation25 + $0x20] sm:$0xff]
          %v1199 = vld [vmem:[#allocation25 + $0x28] sm:$0xff]
          %v1200 = vld [vmem:[#allocation25 + $0x30] sm:$0xff]
          %v1201 = vld [vmem:[#allocation25 + $0x38] sm:$0xff]
          %v1202 = vld [vmem:[#allocation25 + $0x40] sm:$0xff]
          %v1203 = vld [vmem:[#allocation25 + $0x48] sm:$0xff]
          %v1204 = vld [vmem:[#allocation25 + $0x50] sm:$0xff]
          %v1205 = vld [vmem:[#allocation25 + $0x58] sm:$0xff]
          %v1206 = vld [vmem:[#allocation25 + $0x60] sm:$0xff]
          %v1207 = vld [vmem:[#allocation25 + $0x68] sm:$0xff]
          %v1208 = vld [vmem:[#allocation25 + $0x70] sm:$0xff]
          %v1209 = vld [vmem:[#allocation25 + $0x78] sm:$0xff]
          %v1210 = vld [vmem:[#allocation25 + $0x80] sm:$0xff]
          %v1211 = vld [vmem:[#allocation25 + $0x88] sm:$0xff]
          %v1212 = vld [vmem:[#allocation25 + $0x90] sm:$0xff]
          %v1213 = vld [vmem:[#allocation25 + $0x98] sm:$0xff]
          %v1214 = vld [vmem:[#allocation25 + $0xa0] sm:$0xff]
          %v1215 = vld [vmem:[#allocation25 + $0xa8] sm:$0xff]
          %v1216 = vld [vmem:[#allocation25 + $0xb0] sm:$0xff]
          %v1217 = vld [vmem:[#allocation25 + $0xb8] sm:$0xff]
          %v1218 = vld [vmem:[#allocation25 + $0xc0] sm:$0xff]
          %v1219 = vld [vmem:[#allocation25 + $0xc8] sm:$0xff]
          %v1220 = vld [vmem:[#allocation25 + $0xd0] sm:$0xff]
          %v1221 = vld [vmem:[#allocation25 + $0xd8] sm:$0xff]
          %v1222 = vld [vmem:[#allocation25 + $0xe0] sm:$0xff]
          %v1223 = vld [vmem:[#allocation25 + $0xe8] sm:$0xff]
          %v1224 = vld [vmem:[#allocation25 + $0xf0] sm:$0xff]
          %v1225 = vld [vmem:[#allocation25 + $0xf8] sm:$0xff]
          %v1226 = vld [vmem:[#allocation26] sm:$0x3]
          %v1228 = vlaneseq
          %v1229 = vshrl.u32 %v1228, 7
          %v1230 = vsub.s32 0, %v1229
          %v1231 = vrot.slane %v1226, %v1230
          %v1232 = vlaneseq
          %v1233 = vshrl.u32 %v1232, 7
          %v1234 = vsub.s32 1, %v1233
          %v1235 = vrot.slane %v1226, %v1234
          %v1240 = vunpack.c.l.b16 %v1192
          %v1241 = vunpack.c.h.b16 %v1192
          %v1242 = vunpack.c.l.b16 %v1193
          %v1243 = vunpack.c.h.b16 %v1193
          %v1244 = vpack.c.b16 %v1242, %v1240
          %v1245 = vpack.c.b16 %v1243, %v1241
          %v1280 = vunpack.c.l.b16 %v1194
          %v1281 = vunpack.c.h.b16 %v1194
          %v1282 = vunpack.c.l.b16 %v1195
          %v1283 = vunpack.c.h.b16 %v1195
          %v1284 = vunpack.c.l.b16 %v1196
          %v1285 = vunpack.c.h.b16 %v1196
          %v1286 = vunpack.c.l.b16 %v1197
          %v1287 = vunpack.c.h.b16 %v1197
          %v1288 = vunpack.c.l.b16 %v1198
          %v1289 = vunpack.c.h.b16 %v1198
          %v1290 = vunpack.c.l.b16 %v1199
          %v1291 = vunpack.c.h.b16 %v1199
          %v1292 = vunpack.c.l.b16 %v1200
          %v1293 = vunpack.c.h.b16 %v1200
          %v1294 = vunpack.c.l.b16 %v1201
          %v1295 = vunpack.c.h.b16 %v1201
          %v1296 = vunpack.c.l.b16 %v1202
          %v1297 = vunpack.c.h.b16 %v1202
          %v1298 = vunpack.c.l.b16 %v1203
          %v1299 = vunpack.c.h.b16 %v1203
          %v1300 = vunpack.c.l.b16 %v1204
          %v1301 = vunpack.c.h.b16 %v1204
          %v1302 = vunpack.c.l.b16 %v1205
          %v1303 = vunpack.c.h.b16 %v1205
          %v1304 = vunpack.c.l.b16 %v1206
          %v1305 = vunpack.c.h.b16 %v1206
          %v1306 = vunpack.c.l.b16 %v1207
          %v1307 = vunpack.c.h.b16 %v1207
          %v1308 = vunpack.c.l.b16 %v1208
          %v1309 = vunpack.c.h.b16 %v1208
          %v1310 = vunpack.c.l.b16 %v1209
          %v1311 = vunpack.c.h.b16 %v1209
          %v1312 = vunpack.c.l.b16 %v1210
          %v1313 = vunpack.c.h.b16 %v1210
          %v1314 = vunpack.c.l.b16 %v1211
          %v1315 = vunpack.c.h.b16 %v1211
          %v1316 = vunpack.c.l.b16 %v1212
          %v1317 = vunpack.c.h.b16 %v1212
          %v1318 = vunpack.c.l.b16 %v1213
          %v1319 = vunpack.c.h.b16 %v1213
          %v1320 = vunpack.c.l.b16 %v1214
          %v1321 = vunpack.c.h.b16 %v1214
          %v1322 = vunpack.c.l.b16 %v1215
          %v1323 = vunpack.c.h.b16 %v1215
          %v1324 = vunpack.c.l.b16 %v1216
          %v1325 = vunpack.c.h.b16 %v1216
          %v1326 = vunpack.c.l.b16 %v1217
          %v1327 = vunpack.c.h.b16 %v1217
          %v1328 = vunpack.c.l.b16 %v1218
          %v1329 = vunpack.c.h.b16 %v1218
          %v1330 = vunpack.c.l.b16 %v1219
          %v1331 = vunpack.c.h.b16 %v1219
          %v1332 = vunpack.c.l.b16 %v1220
          %v1333 = vunpack.c.h.b16 %v1220
          %v1334 = vunpack.c.l.b16 %v1221
          %v1335 = vunpack.c.h.b16 %v1221
          %v1336 = vunpack.c.l.b16 %v1222
          %v1337 = vunpack.c.h.b16 %v1222
          %v1338 = vunpack.c.l.b16 %v1223
          %v1339 = vunpack.c.h.b16 %v1223
          %v1340 = vunpack.c.l.b16 %v1224
          %v1341 = vunpack.c.h.b16 %v1224
          %v1342 = vunpack.c.l.b16 %v1225
          %v1343 = vunpack.c.h.b16 %v1225
          %v1344 = vpack.c.b16 %v1282, %v1280
          %v1345 = vpack.c.b16 %v1283, %v1281
          %v1346 = vpack.c.b16 %v1286, %v1284
          %v1347 = vpack.c.b16 %v1287, %v1285
          %v1348 = vpack.c.b16 %v1290, %v1288
          %v1349 = vpack.c.b16 %v1291, %v1289
          %v1350 = vpack.c.b16 %v1294, %v1292
          %v1351 = vpack.c.b16 %v1295, %v1293
          %v1352 = vpack.c.b16 %v1298, %v1296
          %v1353 = vpack.c.b16 %v1299, %v1297
          %v1354 = vpack.c.b16 %v1302, %v1300
          %v1355 = vpack.c.b16 %v1303, %v1301
          %v1356 = vpack.c.b16 %v1306, %v1304
          %v1357 = vpack.c.b16 %v1307, %v1305
          %v1358 = vpack.c.b16 %v1310, %v1308
          %v1359 = vpack.c.b16 %v1311, %v1309
          %v1360 = vpack.c.b16 %v1314, %v1312
          %v1361 = vpack.c.b16 %v1315, %v1313
          %v1362 = vpack.c.b16 %v1318, %v1316
          %v1363 = vpack.c.b16 %v1319, %v1317
          %v1364 = vpack.c.b16 %v1322, %v1320
          %v1365 = vpack.c.b16 %v1323, %v1321
          %v1366 = vpack.c.b16 %v1326, %v1324
          %v1367 = vpack.c.b16 %v1327, %v1325
          %v1368 = vpack.c.b16 %v1330, %v1328
          %v1369 = vpack.c.b16 %v1331, %v1329
          %v1370 = vpack.c.b16 %v1334, %v1332
          %v1371 = vpack.c.b16 %v1335, %v1333
          %v1372 = vpack.c.b16 %v1338, %v1336
          %v1373 = vpack.c.b16 %v1339, %v1337
          %v1374 = vpack.c.b16 %v1342, %v1340
          %v1375 = vpack.c.b16 %v1343, %v1341
          %1408 = vmatprep.subr.bf16.mxu0 %v1345
          %1409 = vmatpush1.bf16.msra.mxu0 %v1344
          %1410 = vmatprep.subr.bf16.mxu0 %v1347
          %1411 = vmatpush1.bf16.msra.mxu0 %v1346
          %1412 = vmatprep.subr.bf16.mxu0 %v1349
          %1413 = vmatpush1.bf16.msra.mxu0 %v1348
          %1414 = vmatprep.subr.bf16.mxu0 %v1351
          %1415 = vmatpush1.bf16.msra.mxu0 %v1350
          %1416 = vmatprep.subr.bf16.mxu0 %v1353
          %1417 = vmatpush1.bf16.msra.mxu0 %v1352
          %1418 = vmatprep.subr.bf16.mxu0 %v1355
          %1419 = vmatpush1.bf16.msra.mxu0 %v1354
          %1420 = vmatprep.subr.bf16.mxu0 %v1357
          %1421 = vmatpush1.bf16.msra.mxu0 %v1356
          %1422 = vmatprep.subr.bf16.mxu0 %v1359
          %1423 = vmatpush1.bf16.msra.mxu0 %v1358
          %1424 = vmatprep.subr.bf16.mxu0 %v1361
          %1425 = vmatpush1.bf16.msra.mxu0 %v1360
          %1426 = vmatprep.subr.bf16.mxu0 %v1363
          %1427 = vmatpush1.bf16.msra.mxu0 %v1362
          %1428 = vmatprep.subr.bf16.mxu0 %v1365
          %1429 = vmatpush1.bf16.msra.mxu0 %v1364
          %1430 = vmatprep.subr.bf16.mxu0 %v1367
          %1431 = vmatpush1.bf16.msra.mxu0 %v1366
          %1432 = vmatprep.subr.bf16.mxu0 %v1369
          %1433 = vmatpush1.bf16.msra.mxu0 %v1368
          %1434 = vmatprep.subr.bf16.mxu0 %v1371
          %1435 = vmatpush1.bf16.msra.mxu0 %v1370
          %1436 = vmatprep.subr.bf16.mxu0 %v1373
          %1437 = vmatpush1.bf16.msra.mxu0 %v1372
          %1438 = vmatprep.subr.bf16.mxu0 %v1375
          %1439 = vmatpush1.bf16.msra.mxu0 %v1374
          %1440 = vmatprep.mubr.bf16.mxu0 %v1245
          %1441 = vmatmul.mubr.bf16.gmra.mrb[0].mxu0 %v1244
          %v1442 = vpop.f32.mrb[0].mxu0
          %v1443 = vadd.f32 %v1231, %v1442
          %v1444 = vpop.f32.mrb[0].mxu0
          %v1445 = vadd.f32 %v1235, %v1444
          %v1446 = vpop.f32.mrb[0].mxu0
          %v1447 = vadd.f32 %v1231, %v1446
          %v1448 = vpop.f32.mrb[0].mxu0
          %v1449 = vadd.f32 %v1235, %v1448
          %1450 = vdwg.mxu0
          %1451 = vst [vmem:[%s923] sm:$0xff] %v1443
          %1452 = vst [vmem:[%s923 + $0x8] sm:$0xff] %v1445
          %1453 = vst [vmem:[%s923 + $0x10] sm:$0xff] %v1447
          %1454 = vst [vmem:[%s923 + $0x18] sm:$0xff] %v1449
          %v1455 = vld [vmem:[#allocation16] sm:$0xff]
          %v1456 = vld [vmem:[#allocation16 + $0x8] sm:$0xff]
          %v1457 = vld [vmem:[#allocation17] sm:$0xff]
          %v1458 = vld [vmem:[#allocation17 + $0x8] sm:$0xff]
          %v1459 = vmul.f32 %v1184, %v1455
          %v1460 = vmul.f32 %v1188, %v1456
          %1463 = vrot.lane.b32.xlu0 %v1457, 64
          %v1464 = vpop.permute.xlu0 %1463
          %1465 = vrot.lane.b32.xlu0 %v1458, 64
          %v1466 = vpop.permute.xlu0 %1465
          %v1469 = vmul.f32 %v1184, %v1464
          %v1470 = vmul.f32 %v1188, %v1466
          %1473 = vrot.lane.b32.xlu0 %v1469, 64
          %v1474 = vpop.permute.xlu0 %1473
          %1475 = vrot.lane.b32.xlu0 %v1470, 64
          %v1476 = vpop.permute.xlu0 %1475
          %v1479 = vsub.f32 %v1459, %v1474
          %v1480 = vsub.f32 %v1460, %v1476
          %v1481 = vmul.f32 %v1184, %v1457
          %v1482 = vmul.f32 %v1188, %v1458
          %1485 = vrot.lane.b32.xlu0 %v1455, 64
          %v1486 = vpop.permute.xlu0 %1485
          %1487 = vrot.lane.b32.xlu0 %v1456, 64
          %v1488 = vpop.permute.xlu0 %1487
          %v1491 = vmul.f32 %v1184, %v1486
          %v1492 = vmul.f32 %v1188, %v1488
          %1495 = vrot.lane.b32.xlu0 %v1491, 64
          %v1496 = vpop.permute.xlu0 %1495
          %1497 = vrot.lane.b32.xlu0 %v1492, 64
          %v1498 = vpop.permute.xlu0 %1497
          %v1501 = vadd.f32 %v1481, %v1496
          %v1502 = vadd.f32 %v1482, %v1498
          %1505 = vrot.lane.b32.xlu0 %v1501, 64
          %v1506 = vpop.permute.xlu0 %1505
          %1507 = vrot.lane.b32.xlu0 %v1502, 64
          %v1508 = vpop.permute.xlu0 %1507
          %vm1511 = vcmask 523264
          %v1512 = vsel %vm1511, %v1479, %v1506
          %v1513 = vsel %vm1511, %v1480, %v1508
          %1514 = vst [vmem:[%s916] sm:$0xff] %v1512
          %1515 = vst [vmem:[%s916 + $0x10] sm:$0xff] %v1513
          %v1516 = vpack.c.bf16 %v1513, %v1512
          %1517 = vst [vmem:[#allocation2] sm:$0xff] %v1516
          %v1518 = vpack.c.bf16 %v1447, %v1443
          %1519 = vst [vmem:[#allocation3] sm:$0xff] %v1518
          %v1520 = vmul.f32 %v1186, %v1455
          %v1521 = vmul.f32 %v1190, %v1456
          %v1522 = vmul.f32 %v1186, %v1464
          %v1523 = vmul.f32 %v1190, %v1466
          %1526 = vrot.lane.b32.xlu0 %v1522, 64
          %v1527 = vpop.permute.xlu0 %1526
          %1528 = vrot.lane.b32.xlu0 %v1523, 64
          %v1529 = vpop.permute.xlu0 %1528
          %v1532 = vsub.f32 %v1520, %v1527
          %v1533 = vsub.f32 %v1521, %v1529
          %v1534 = vmul.f32 %v1186, %v1457
          %v1535 = vmul.f32 %v1190, %v1458
          %v1536 = vmul.f32 %v1186, %v1486
          %v1537 = vmul.f32 %v1190, %v1488
          %1540 = vrot.lane.b32.xlu0 %v1536, 64
          %v1541 = vpop.permute.xlu0 %1540
          %1542 = vrot.lane.b32.xlu0 %v1537, 64
          %v1543 = vpop.permute.xlu0 %1542
          %v1546 = vadd.f32 %v1534, %v1541
          %v1547 = vadd.f32 %v1535, %v1543
          %1550 = vrot.lane.b32.xlu0 %v1546, 64
          %v1551 = vpop.permute.xlu0 %1550
          %1552 = vrot.lane.b32.xlu0 %v1547, 64
          %v1553 = vpop.permute.xlu0 %1552
          %v1556 = vsel %vm1511, %v1532, %v1551
          %v1557 = vsel %vm1511, %v1533, %v1553
          %1558 = vst [vmem:[%s916 + $0x8] sm:$0xff] %v1556
          %1559 = vst [vmem:[%s916 + $0x18] sm:$0xff] %v1557
          %v1560 = vpack.c.bf16 %v1557, %v1556
          %s1561 = scalar_lea.vmem [#allocation2], 8
          %1562 = vst [vmem:[%s1561] sm:$0xff] %v1560
          %v1563 = vpack.c.bf16 %v1449, %v1445
          %s1564 = scalar_lea.vmem [#allocation3], 8
          %1565 = vst [vmem:[%s1564] sm:$0xff] %v1563
        $region152: #{tpu_custom_call.1} parent=83 // pred_fallthru
          _
        %v1566 = vld [vmem:[%s773] sm:$0xff]
        %v1567 = vld [vmem:[%s773 + $0x8] sm:$0xff]
        %v1568 = vld [vmem:[#allocation19] sm:$0xff]
        %v1569 = vld [vmem:[#allocation19 + $0x8] sm:$0xff]
        %v1570 = vld [vmem:[#allocation19 + $0x10] sm:$0xff]
        %v1571 = vld [vmem:[#allocation19 + $0x18] sm:$0xff]
        %v1572 = vld [vmem:[#allocation19 + $0x20] sm:$0xff]
        %v1573 = vld [vmem:[#allocation19 + $0x28] sm:$0xff]
        %v1574 = vld [vmem:[#allocation19 + $0x30] sm:$0xff]
        %v1575 = vld [vmem:[#allocation19 + $0x38] sm:$0xff]
        %v1576 = vld [vmem:[#allocation19 + $0x40] sm:$0xff]
        %v1577 = vld [vmem:[#allocation19 + $0x48] sm:$0xff]
        %v1578 = vld [vmem:[#allocation19 + $0x50] sm:$0xff]
        %v1579 = vld [vmem:[#allocation19 + $0x58] sm:$0xff]
        %v1580 = vld [vmem:[#allocation19 + $0x60] sm:$0xff]
        %v1581 = vld [vmem:[#allocation19 + $0x68] sm:$0xff]
        %v1582 = vld [vmem:[#allocation19 + $0x70] sm:$0xff]
        %v1583 = vld [vmem:[#allocation19 + $0x78] sm:$0xff]
        %v1584 = vld [vmem:[#allocation19 + $0x80] sm:$0xff]
        %v1585 = vld [vmem:[#allocation19 + $0x88] sm:$0xff]
        %v1586 = vld [vmem:[#allocation19 + $0x90] sm:$0xff]
        %v1587 = vld [vmem:[#allocation19 + $0x98] sm:$0xff]
        %v1588 = vld [vmem:[#allocation19 + $0xa0] sm:$0xff]
        %v1589 = vld [vmem:[#allocation19 + $0xa8] sm:$0xff]
        %v1590 = vld [vmem:[#allocation19 + $0xb0] sm:$0xff]
        %v1591 = vld [vmem:[#allocation19 + $0xb8] sm:$0xff]
        %v1592 = vld [vmem:[#allocation19 + $0xc0] sm:$0xff]
        %v1593 = vld [vmem:[#allocation19 + $0xc8] sm:$0xff]
        %v1594 = vld [vmem:[#allocation19 + $0xd0] sm:$0xff]
        %v1595 = vld [vmem:[#allocation19 + $0xd8] sm:$0xff]
        %v1596 = vld [vmem:[#allocation19 + $0xe0] sm:$0xff]
        %v1597 = vld [vmem:[#allocation19 + $0xe8] sm:$0xff]
        %v1598 = vld [vmem:[#allocation19 + $0xf0] sm:$0xff]
        %v1599 = vld [vmem:[#allocation19 + $0xf8] sm:$0xff]
        %v1600 = vld [vmem:[#allocation20] sm:$0x3]
        %v1602 = vlaneseq
        %v1603 = vshrl.u32 %v1602, 7
        %v1604 = vsub.s32 0, %v1603
        %v1605 = vrot.slane %v1600, %v1604
        %v1606 = vlaneseq
        %v1607 = vshrl.u32 %v1606, 7
        %v1608 = vsub.s32 1, %v1607
        %v1609 = vrot.slane %v1600, %v1608
        %v1614 = vunpack.c.l.b16 %v1566
        %v1615 = vunpack.c.h.b16 %v1566
        %v1616 = vunpack.c.l.b16 %v1567
        %v1617 = vunpack.c.h.b16 %v1567
        %v1618 = vpack.c.b16 %v1616, %v1614
        %v1619 = vpack.c.b16 %v1617, %v1615
        %v1654 = vunpack.c.l.b16 %v1568
        %v1655 = vunpack.c.h.b16 %v1568
        %v1656 = vunpack.c.l.b16 %v1569
        %v1657 = vunpack.c.h.b16 %v1569
        %v1658 = vunpack.c.l.b16 %v1570
        %v1659 = vunpack.c.h.b16 %v1570
        %v1660 = vunpack.c.l.b16 %v1571
        %v1661 = vunpack.c.h.b16 %v1571
        %v1662 = vunpack.c.l.b16 %v1572
        %v1663 = vunpack.c.h.b16 %v1572
        %v1664 = vunpack.c.l.b16 %v1573
        %v1665 = vunpack.c.h.b16 %v1573
        %v1666 = vunpack.c.l.b16 %v1574
        %v1667 = vunpack.c.h.b16 %v1574
        %v1668 = vunpack.c.l.b16 %v1575
        %v1669 = vunpack.c.h.b16 %v1575
        %v1670 = vunpack.c.l.b16 %v1576
        %v1671 = vunpack.c.h.b16 %v1576
        %v1672 = vunpack.c.l.b16 %v1577
        %v1673 = vunpack.c.h.b16 %v1577
        %v1674 = vunpack.c.l.b16 %v1578
        %v1675 = vunpack.c.h.b16 %v1578
        %v1676 = vunpack.c.l.b16 %v1579
        %v1677 = vunpack.c.h.b16 %v1579
        %v1678 = vunpack.c.l.b16 %v1580
        %v1679 = vunpack.c.h.b16 %v1580
        %v1680 = vunpack.c.l.b16 %v1581
        %v1681 = vunpack.c.h.b16 %v1581
        %v1682 = vunpack.c.l.b16 %v1582
        %v1683 = vunpack.c.h.b16 %v1582
        %v1684 = vunpack.c.l.b16 %v1583
        %v1685 = vunpack.c.h.b16 %v1583
        %v1686 = vunpack.c.l.b16 %v1584
        %v1687 = vunpack.c.h.b16 %v1584
        %v1688 = vunpack.c.l.b16 %v1585
        %v1689 = vunpack.c.h.b16 %v1585
        %v1690 = vunpack.c.l.b16 %v1586
        %v1691 = vunpack.c.h.b16 %v1586
        %v1692 = vunpack.c.l.b16 %v1587
        %v1693 = vunpack.c.h.b16 %v1587
        %v1694 = vunpack.c.l.b16 %v1588
        %v1695 = vunpack.c.h.b16 %v1588
        %v1696 = vunpack.c.l.b16 %v1589
        %v1697 = vunpack.c.h.b16 %v1589
        %v1698 = vunpack.c.l.b16 %v1590
        %v1699 = vunpack.c.h.b16 %v1590
        %v1700 = vunpack.c.l.b16 %v1591
        %v1701 = vunpack.c.h.b16 %v1591
        %v1702 = vunpack.c.l.b16 %v1592
        %v1703 = vunpack.c.h.b16 %v1592
        %v1704 = vunpack.c.l.b16 %v1593
        %v1705 = vunpack.c.h.b16 %v1593
        %v1706 = vunpack.c.l.b16 %v1594
        %v1707 = vunpack.c.h.b16 %v1594
        %v1708 = vunpack.c.l.b16 %v1595
        %v1709 = vunpack.c.h.b16 %v1595
        %v1710 = vunpack.c.l.b16 %v1596
        %v1711 = vunpack.c.h.b16 %v1596
        %v1712 = vunpack.c.l.b16 %v1597
        %v1713 = vunpack.c.h.b16 %v1597
        %v1714 = vunpack.c.l.b16 %v1598
        %v1715 = vunpack.c.h.b16 %v1598
        %v1716 = vunpack.c.l.b16 %v1599
        %v1717 = vunpack.c.h.b16 %v1599
        %v1718 = vpack.c.b16 %v1656, %v1654
        %v1719 = vpack.c.b16 %v1657, %v1655
        %v1720 = vpack.c.b16 %v1660, %v1658
        %v1721 = vpack.c.b16 %v1661, %v1659
        %v1722 = vpack.c.b16 %v1664, %v1662
        %v1723 = vpack.c.b16 %v1665, %v1663
        %v1724 = vpack.c.b16 %v1668, %v1666
        %v1725 = vpack.c.b16 %v1669, %v1667
        %v1726 = vpack.c.b16 %v1672, %v1670
        %v1727 = vpack.c.b16 %v1673, %v1671
        %v1728 = vpack.c.b16 %v1676, %v1674
        %v1729 = vpack.c.b16 %v1677, %v1675
        %v1730 = vpack.c.b16 %v1680, %v1678
        %v1731 = vpack.c.b16 %v1681, %v1679
        %v1732 = vpack.c.b16 %v1684, %v1682
        %v1733 = vpack.c.b16 %v1685, %v1683
        %v1734 = vpack.c.b16 %v1688, %v1686
        %v1735 = vpack.c.b16 %v1689, %v1687
        %v1736 = vpack.c.b16 %v1692, %v1690
        %v1737 = vpack.c.b16 %v1693, %v1691
        %v1738 = vpack.c.b16 %v1696, %v1694
        %v1739 = vpack.c.b16 %v1697, %v1695
        %v1740 = vpack.c.b16 %v1700, %v1698
        %v1741 = vpack.c.b16 %v1701, %v1699
        %v1742 = vpack.c.b16 %v1704, %v1702
        %v1743 = vpack.c.b16 %v1705, %v1703
        %v1744 = vpack.c.b16 %v1708, %v1706
        %v1745 = vpack.c.b16 %v1709, %v1707
        %v1746 = vpack.c.b16 %v1712, %v1710
        %v1747 = vpack.c.b16 %v1713, %v1711
        %v1748 = vpack.c.b16 %v1716, %v1714
        %v1749 = vpack.c.b16 %v1717, %v1715
        %1782 = vmatprep.subr.bf16.mxu0 %v1719
        %1783 = vmatpush1.bf16.msra.mxu0 %v1718
        %1784 = vmatprep.subr.bf16.mxu0 %v1721
        %1785 = vmatpush1.bf16.msra.mxu0 %v1720
        %1786 = vmatprep.subr.bf16.mxu0 %v1723
        %1787 = vmatpush1.bf16.msra.mxu0 %v1722
        %1788 = vmatprep.subr.bf16.mxu0 %v1725
        %1789 = vmatpush1.bf16.msra.mxu0 %v1724
        %1790 = vmatprep.subr.bf16.mxu0 %v1727
        %1791 = vmatpush1.bf16.msra.mxu0 %v1726
        %1792 = vmatprep.subr.bf16.mxu0 %v1729
        %1793 = vmatpush1.bf16.msra.mxu0 %v1728
        %1794 = vmatprep.subr.bf16.mxu0 %v1731
        %1795 = vmatpush1.bf16.msra.mxu0 %v1730
        %1796 = vmatprep.subr.bf16.mxu0 %v1733
        %1797 = vmatpush1.bf16.msra.mxu0 %v1732
        %1798 = vmatprep.subr.bf16.mxu0 %v1735
        %1799 = vmatpush1.bf16.msra.mxu0 %v1734
        %1800 = vmatprep.subr.bf16.mxu0 %v1737
        %1801 = vmatpush1.bf16.msra.mxu0 %v1736
        %1802 = vmatprep.subr.bf16.mxu0 %v1739
        %1803 = vmatpush1.bf16.msra.mxu0 %v1738
        %1804 = vmatprep.subr.bf16.mxu0 %v1741
        %1805 = vmatpush1.bf16.msra.mxu0 %v1740
        %1806 = vmatprep.subr.bf16.mxu0 %v1743
        %1807 = vmatpush1.bf16.msra.mxu0 %v1742
        %1808 = vmatprep.subr.bf16.mxu0 %v1745
        %1809 = vmatpush1.bf16.msra.mxu0 %v1744
        %1810 = vmatprep.subr.bf16.mxu0 %v1747
        %1811 = vmatpush1.bf16.msra.mxu0 %v1746
        %1812 = vmatprep.subr.bf16.mxu0 %v1749
        %1813 = vmatpush1.bf16.msra.mxu0 %v1748
        %1814 = vmatprep.mubr.bf16.mxu0 %v1619
        %1815 = vmatmul.mubr.bf16.gmra.mrb[0].mxu0 %v1618
        %v1816 = vpop.f32.mrb[0].mxu0
        %v1817 = vadd.f32 %v1605, %v1816
        %v1818 = vpop.f32.mrb[0].mxu0
        %v1819 = vadd.f32 %v1609, %v1818
        %v1820 = vpop.f32.mrb[0].mxu0
        %v1821 = vadd.f32 %v1605, %v1820
        %v1822 = vpop.f32.mrb[0].mxu0
        %v1823 = vadd.f32 %v1609, %v1822
        %1824 = vdwg.mxu0
        %v1825 = vld [vmem:[#allocation13] sm:$0xff]
        %v1826 = vld [vmem:[#allocation13 + $0x8] sm:$0xff]
        %v1827 = vld [vmem:[#allocation14] sm:$0xff]
        %v1828 = vld [vmem:[#allocation14 + $0x8] sm:$0xff]
        %v1829 = vld [vmem:[%s799] sm:$0x1]
        %vm1830 = vcmp.lt.f32.partialorder %v1829, 0.0
        %v1831 = vmul.f32 %v1817, %v1825
        %v1832 = vmul.f32 %v1821, %v1826
        %1835 = vrot.lane.b32.xlu0 %v1827, 64
        %v1836 = vpop.permute.xlu0 %1835
        %1837 = vrot.lane.b32.xlu0 %v1828, 64
        %v1838 = vpop.permute.xlu0 %1837
        %v1841 = vmul.f32 %v1817, %v1836
        %v1842 = vmul.f32 %v1821, %v1838
        %1845 = vrot.lane.b32.xlu0 %v1841, 64
        %v1846 = vpop.permute.xlu0 %1845
        %1847 = vrot.lane.b32.xlu0 %v1842, 64
        %v1848 = vpop.permute.xlu0 %1847
        %v1851 = vsub.f32 %v1831, %v1846
        %v1852 = vsub.f32 %v1832, %v1848
        %v1853 = vmul.f32 %v1817, %v1827
        %v1854 = vmul.f32 %v1821, %v1828
        %1857 = vrot.lane.b32.xlu0 %v1825, 64
        %v1858 = vpop.permute.xlu0 %1857
        %1859 = vrot.lane.b32.xlu0 %v1826, 64
        %v1860 = vpop.permute.xlu0 %1859
        %v1863 = vmul.f32 %v1817, %v1858
        %v1864 = vmul.f32 %v1821, %v1860
        %1867 = vrot.lane.b32.xlu0 %v1863, 64
        %v1868 = vpop.permute.xlu0 %1867
        %1869 = vrot.lane.b32.xlu0 %v1864, 64
        %v1870 = vpop.permute.xlu0 %1869
        %v1873 = vadd.f32 %v1853, %v1868
        %v1874 = vadd.f32 %v1854, %v1870
        %1877 = vrot.lane.b32.xlu0 %v1873, 64
        %v1878 = vpop.permute.xlu0 %1877
        %1879 = vrot.lane.b32.xlu0 %v1874, 64
        %v1880 = vpop.permute.xlu0 %1879
        %vm1883 = vcmask 523264
        %v1884 = vsel %vm1883, %v1851, %v1878
        %v1885 = vsel %vm1883, %v1852, %v1880
        %v1886 = vpack.c.bf16 %v1885, %v1884
        %v1887 = vld [vmem:[#allocation2] sm:$0xff]
        %v1889 = vlaneseq
        %v1890 = vshrl.u32 %v1889, 7
        %v1891 = vsub.s32 0, %v1890
        %v1892 = vrot.slane %v1829, %v1891
        %1894 = vmatprep.subr.bf16.mxu0 0
        %1895 = vmatpush1.bf16.xpose.msra.mxu0 %v1887
        %1896 = vmatprep.subr.bf16.mxu0 0
        %1897 = vmatpush1.bf16.xpose.msra.mxu0 0
        %1898 = vmatprep.subr.bf16.mxu0 0
        %1899 = vmatpush1.bf16.xpose.msra.mxu0 0
        %1900 = vmatprep.subr.bf16.mxu0 0
        %1901 = vmatpush1.bf16.xpose.msra.mxu0 0
        %1902 = vmatprep.subr.bf16.mxu0 0
        %1903 = vmatpush1.bf16.xpose.msra.mxu0 0
        %1904 = vmatprep.subr.bf16.mxu0 0
        %1905 = vmatpush1.bf16.xpose.msra.mxu0 0
        %1906 = vmatprep.subr.bf16.mxu0 0
        %1907 = vmatpush1.bf16.xpose.msra.mxu0 0
        %1908 = vmatprep.subr.bf16.mxu0 0
        %1909 = vmatpush1.bf16.xpose.msra.mxu0 0
        %1910 = vmatprep.subr.bf16.mxu0 0
        %1911 = vmatpush1.bf16.xpose.msra.mxu0 0
        %1912 = vmatprep.subr.bf16.mxu0 0
        %1913 = vmatpush1.bf16.xpose.msra.mxu0 0
        %1914 = vmatprep.subr.bf16.mxu0 0
        %1915 = vmatpush1.bf16.xpose.msra.mxu0 0
        %1916 = vmatprep.subr.bf16.mxu0 0
        %1917 = vmatpush1.bf16.xpose.msra.mxu0 0
        %1918 = vmatprep.subr.bf16.mxu0 0
        %1919 = vmatpush1.bf16.xpose.msra.mxu0 0
        %1920 = vmatprep.subr.bf16.mxu0 0
        %1921 = vmatpush1.bf16.xpose.msra.mxu0 0
        %1922 = vmatprep.subr.bf16.mxu0 0
        %1923 = vmatpush1.bf16.xpose.msra.mxu0 0
        %1924 = vmatprep.subr.bf16.mxu0 0
        %1925 = vmatpush1.bf16.xpose.msra.mxu0 0
        %1926 = vmatprep.mubr.bf16.mxu0 0
        %1927 = vmatmul.mubr.bf16.gmra.mrb[0].mxu0 %v1886
        %v1928 = vpop.f32.mrb[0].mxu0
        %v1929 = vadd.f32 %v1892, %v1928
        %v1930 = vpop.f32.mrb[0].mxu0
        %v1931 = vpop.f32.mrb[0].mxu0
        %v1932 = vadd.f32 %v1892, %v1931
        %v1933 = vpop.f32.mrb[0].mxu0
        %1934 = vdwg.mxu0
        %vm1935 = vcmask 130048
        %v1936 = vsel %vm1935, %v1929, -inf
        %1937 = vmax.xlane.f32.xlu0 %v1936
        %v1938 = vpop.xlane.xlu0 %1937
        %v1939 = vsel %vm1935, %v1932, -inf
        %1940 = vmax.xlane.f32.xlu0 %v1939
        %v1941 = vpop.xlane.xlu0 %1940
        %v1942 = vsub.f32 %v1929, %v1938
        %v1943 = vsub.f32 %v1932, %v1941
        %v1944 = vmul.f32 %v1942, 1.442695
        %v1945 = vpow.pop %v1944
        %v1946 = vmul.f32 %v1943, 1.442695
        %v1947 = vpow.pop %v1946
        %v1948 = vsel %vm1935, %v1945, 0.0
        %1949 = vadd.xlane.f32.xlu0 %v1948
        %v1950 = vpop.xlane.xlu0 %1949
        %v1951 = vsel %vm1935, %v1947, 0.0
        %1952 = vadd.xlane.f32.xlu0 %v1951
        %v1953 = vpop.xlane.xlu0 %1952
        %v1954 = vrcp.pop %v1950
        %v1955 = vmul.f32 %v1945, %v1954
        %v1956 = vrcp.pop %v1953
        %v1957 = vmul.f32 %v1947, %v1956
        %v1958 = vsel %vm1830, 1, 0
        %v1959 = vlaneseq
        %v1960 = vshrl.u32 %v1959, 7
        %v1961 = vsub.s32 0, %v1960
        %v1962 = vrot.slane %v1958, %v1961
        %vm1963 = vcmp.eq.s32.totalorder %v1962, 1
        %v1964 = vsel %vm1963, 0.0, %v1955
        %v1965 = vsel %vm1963, 0.0, %v1957
        %v1966 = vpack.c.bf16 %v1965, %v1964
        %v1967 = vld [vmem:[#allocation3] sm:$0xff]
        %v1969 = vsel %vm1935, %v1966, 0
        %1971 = vmatprep.subr.bf16.mxu0 0
        %1972 = vmatpush1.bf16.msra.mxu0 %v1967
        %1973 = vmatprep.subr.bf16.mxu0 0
        %1974 = vmatpush1.bf16.msra.mxu0 0
        %1975 = vmatprep.subr.bf16.mxu0 0
        %1976 = vmatpush1.bf16.msra.mxu0 0
        %1977 = vmatprep.subr.bf16.mxu0 0
        %1978 = vmatpush1.bf16.msra.mxu0 0
        %1979 = vmatprep.subr.bf16.mxu0 0
        %1980 = vmatpush1.bf16.msra.mxu0 0
        %1981 = vmatprep.subr.bf16.mxu0 0
        %1982 = vmatpush1.bf16.msra.mxu0 0
        %1983 = vmatprep.subr.bf16.mxu0 0
        %1984 = vmatpush1.bf16.msra.mxu0 0
        %1985 = vmatprep.subr.bf16.mxu0 0
        %1986 = vmatpush1.bf16.msra.mxu0 0
        %1987 = vmatprep.subr.bf16.mxu0 0
        %1988 = vmatpush1.bf16.msra.mxu0 0
        %1989 = vmatprep.subr.bf16.mxu0 0
        %1990 = vmatpush1.bf16.msra.mxu0 0
        %1991 = vmatprep.subr.bf16.mxu0 0
        %1992 = vmatpush1.bf16.msra.mxu0 0
        %1993 = vmatprep.subr.bf16.mxu0 0
        %1994 = vmatpush1.bf16.msra.mxu0 0
        %1995 = vmatprep.subr.bf16.mxu0 0
        %1996 = vmatpush1.bf16.msra.mxu0 0
        %1997 = vmatprep.subr.bf16.mxu0 0
        %1998 = vmatpush1.bf16.msra.mxu0 0
        %1999 = vmatprep.subr.bf16.mxu0 0
        %2000 = vmatpush1.bf16.msra.mxu0 0
        %2001 = vmatprep.subr.bf16.mxu0 0
        %2002 = vmatpush1.bf16.msra.mxu0 0
        %2003 = vmatprep.mubr.bf16.mxu0 0
        %2004 = vmatmul.mubr.bf16.gmra.mrb[0].mxu0 %v1969
        %v2005 = vpop.f32.mrb[0].mxu0
        %v2006 = vadd.f32 0.0, %v2005
        %v2007 = vpop.f32.mrb[0].mxu0
        %v2008 = vpop.f32.mrb[0].mxu0
        %v2009 = vadd.f32 0.0, %v2008
        %v2010 = vpop.f32.mrb[0].mxu0
        %2011 = vdwg.mxu0
        %v2012 = vpack.c.bf16 %v2009, %v2006
        %2013 = vst [vmem:[#allocation4] sm:$0xff] %v2012
        %v2014 = vmul.f32 %v1819, %v1825
        %v2015 = vmul.f32 %v1823, %v1826
        %v2016 = vmul.f32 %v1819, %v1836
        %v2017 = vmul.f32 %v1823, %v1838
        %2020 = vrot.lane.b32.xlu0 %v2016, 64
        %v2021 = vpop.permute.xlu0 %2020
        %2022 = vrot.lane.b32.xlu0 %v2017, 64
        %v2023 = vpop.permute.xlu0 %2022
        %v2026 = vsub.f32 %v2014, %v2021
        %v2027 = vsub.f32 %v2015, %v2023
        %v2028 = vmul.f32 %v1819, %v1827
        %v2029 = vmul.f32 %v1823, %v1828
        %v2030 = vmul.f32 %v1819, %v1858
        %v2031 = vmul.f32 %v1823, %v1860
        %2034 = vrot.lane.b32.xlu0 %v2030, 64
        %v2035 = vpop.permute.xlu0 %2034
        %2036 = vrot.lane.b32.xlu0 %v2031, 64
        %v2037 = vpop.permute.xlu0 %2036
        %v2040 = vadd.f32 %v2028, %v2035
        %v2041 = vadd.f32 %v2029, %v2037
        %2044 = vrot.lane.b32.xlu0 %v2040, 64
        %v2045 = vpop.permute.xlu0 %2044
        %2046 = vrot.lane.b32.xlu0 %v2041, 64
        %v2047 = vpop.permute.xlu0 %2046
        %v2050 = vsel %vm1883, %v2026, %v2045
        %v2051 = vsel %vm1883, %v2027, %v2047
        %v2052 = vpack.c.bf16 %v2051, %v2050
        %s2053 = scalar_lea.vmem [#allocation2], 8
        %v2054 = vld [vmem:[%s2053] sm:$0xff]
        %2055 = vmatprep.subr.bf16.mxu0 0
        %2056 = vmatpush1.bf16.xpose.msra.mxu0 %v2054
        %2057 = vmatprep.subr.bf16.mxu0 0
        %2058 = vmatpush1.bf16.xpose.msra.mxu0 0
        %2059 = vmatprep.subr.bf16.mxu0 0
        %2060 = vmatpush1.bf16.xpose.msra.mxu0 0
        %2061 = vmatprep.subr.bf16.mxu0 0
        %2062 = vmatpush1.bf16.xpose.msra.mxu0 0
        %2063 = vmatprep.subr.bf16.mxu0 0
        %2064 = vmatpush1.bf16.xpose.msra.mxu0 0
        %2065 = vmatprep.subr.bf16.mxu0 0
        %2066 = vmatpush1.bf16.xpose.msra.mxu0 0
        %2067 = vmatprep.subr.bf16.mxu0 0
        %2068 = vmatpush1.bf16.xpose.msra.mxu0 0
        %2069 = vmatprep.subr.bf16.mxu0 0
        %2070 = vmatpush1.bf16.xpose.msra.mxu0 0
        %2071 = vmatprep.subr.bf16.mxu0 0
        %2072 = vmatpush1.bf16.xpose.msra.mxu0 0
        %2073 = vmatprep.subr.bf16.mxu0 0
        %2074 = vmatpush1.bf16.xpose.msra.mxu0 0
        %2075 = vmatprep.subr.bf16.mxu0 0
        %2076 = vmatpush1.bf16.xpose.msra.mxu0 0
        %2077 = vmatprep.subr.bf16.mxu0 0
        %2078 = vmatpush1.bf16.xpose.msra.mxu0 0
        %2079 = vmatprep.subr.bf16.mxu0 0
        %2080 = vmatpush1.bf16.xpose.msra.mxu0 0
        %2081 = vmatprep.subr.bf16.mxu0 0
        %2082 = vmatpush1.bf16.xpose.msra.mxu0 0
        %2083 = vmatprep.subr.bf16.mxu0 0
        %2084 = vmatpush1.bf16.xpose.msra.mxu0 0
        %2085 = vmatprep.subr.bf16.mxu0 0
        %2086 = vmatpush1.bf16.xpose.msra.mxu0 0
        %2087 = vmatprep.mubr.bf16.mxu0 0
        %2088 = vmatmul.mubr.bf16.gmra.mrb[0].mxu0 %v2052
        %v2089 = vpop.f32.mrb[0].mxu0
        %v2090 = vadd.f32 %v1892, %v2089
        %v2091 = vpop.f32.mrb[0].mxu0
        %v2092 = vpop.f32.mrb[0].mxu0
        %v2093 = vadd.f32 %v1892, %v2092
        %v2094 = vpop.f32.mrb[0].mxu0
        %2095 = vdwg.mxu0
        %v2096 = vsel %vm1935, %v2090, -inf
        %2097 = vmax.xlane.f32.xlu0 %v2096
        %v2098 = vpop.xlane.xlu0 %2097
        %v2099 = vsel %vm1935, %v2093, -inf
        %2100 = vmax.xlane.f32.xlu0 %v2099
        %v2101 = vpop.xlane.xlu0 %2100
        %v2102 = vsub.f32 %v2090, %v2098
        %v2103 = vsub.f32 %v2093, %v2101
        %v2104 = vmul.f32 %v2102, 1.442695
        %v2105 = vpow.pop %v2104
        %v2106 = vmul.f32 %v2103, 1.442695
        %v2107 = vpow.pop %v2106
        %v2108 = vsel %vm1935, %v2105, 0.0
        %2109 = vadd.xlane.f32.xlu0 %v2108
        %v2110 = vpop.xlane.xlu0 %2109
        %v2111 = vsel %vm1935, %v2107, 0.0
        %2112 = vadd.xlane.f32.xlu0 %v2111
        %v2113 = vpop.xlane.xlu0 %2112
        %v2114 = vrcp.pop %v2110
        %v2115 = vmul.f32 %v2105, %v2114
        %v2116 = vrcp.pop %v2113
        %v2117 = vmul.f32 %v2107, %v2116
        %v2118 = vsel %vm1963, 0.0, %v2115
        %v2119 = vsel %vm1963, 0.0, %v2117
        %v2120 = vpack.c.bf16 %v2119, %v2118
        %s2121 = scalar_lea.vmem [#allocation3], 8
        %v2122 = vld [vmem:[%s2121] sm:$0xff]
        %v2124 = vsel %vm1935, %v2120, 0
        %2126 = vmatprep.subr.bf16.mxu0 0
        %2127 = vmatpush1.bf16.msra.mxu0 %v2122
        %2128 = vmatprep.subr.bf16.mxu0 0
        %2129 = vmatpush1.bf16.msra.mxu0 0
        %2130 = vmatprep.subr.bf16.mxu0 0
        %2131 = vmatpush1.bf16.msra.mxu0 0
        %2132 = vmatprep.subr.bf16.mxu0 0
        %2133 = vmatpush1.bf16.msra.mxu0 0
        %2134 = vmatprep.subr.bf16.mxu0 0
        %2135 = vmatpush1.bf16.msra.mxu0 0
        %2136 = vmatprep.subr.bf16.mxu0 0
        %2137 = vmatpush1.bf16.msra.mxu0 0
        %2138 = vmatprep.subr.bf16.mxu0 0
        %2139 = vmatpush1.bf16.msra.mxu0 0
        %2140 = vmatprep.subr.bf16.mxu0 0
        %2141 = vmatpush1.bf16.msra.mxu0 0
        %2142 = vmatprep.subr.bf16.mxu0 0
        %2143 = vmatpush1.bf16.msra.mxu0 0
        %2144 = vmatprep.subr.bf16.mxu0 0
        %2145 = vmatpush1.bf16.msra.mxu0 0
        %2146 = vmatprep.subr.bf16.mxu0 0
        %2147 = vmatpush1.bf16.msra.mxu0 0
        %2148 = vmatprep.subr.bf16.mxu0 0
        %2149 = vmatpush1.bf16.msra.mxu0 0
        %2150 = vmatprep.subr.bf16.mxu0 0
        %2151 = vmatpush1.bf16.msra.mxu0 0
        %2152 = vmatprep.subr.bf16.mxu0 0
        %2153 = vmatpush1.bf16.msra.mxu0 0
        %2154 = vmatprep.subr.bf16.mxu0 0
        %2155 = vmatpush1.bf16.msra.mxu0 0
        %2156 = vmatprep.subr.bf16.mxu0 0
        %2157 = vmatpush1.bf16.msra.mxu0 0
        %2158 = vmatprep.mubr.bf16.mxu0 0
        %2159 = vmatmul.mubr.bf16.gmra.mrb[0].mxu0 %v2124
        %v2160 = vpop.f32.mrb[0].mxu0
        %v2161 = vadd.f32 0.0, %v2160
        %v2162 = vpop.f32.mrb[0].mxu0
        %v2163 = vpop.f32.mrb[0].mxu0
        %v2164 = vadd.f32 0.0, %v2163
        %v2165 = vpop.f32.mrb[0].mxu0
        %2166 = vdwg.mxu0
        %v2167 = vpack.c.bf16 %v2164, %v2161
        %2168 = vst [vmem:[#allocation4 + $0x8] sm:$0xff] %v2167
        %v2169 = vld [vmem:[#allocation4] sm:$0xff]
        %v2170 = vld [vmem:[#allocation4 + $0x8] sm:$0xff]
        %v2171 = vld [vmem:[#allocation28] sm:$0xff]
        %v2172 = vld [vmem:[#allocation28 + $0x8] sm:$0xff]
        %v2173 = vld [vmem:[#allocation28 + $0x10] sm:$0xff]
        %v2174 = vld [vmem:[#allocation28 + $0x18] sm:$0xff]
        %v2175 = vld [vmem:[#allocation28 + $0x20] sm:$0xff]
        %v2176 = vld [vmem:[#allocation28 + $0x28] sm:$0xff]
        %v2177 = vld [vmem:[#allocation28 + $0x30] sm:$0xff]
        %v2178 = vld [vmem:[#allocation28 + $0x38] sm:$0xff]
        %v2179 = vld [vmem:[#allocation28 + $0x40] sm:$0xff]
        %v2180 = vld [vmem:[#allocation28 + $0x48] sm:$0xff]
        %v2181 = vld [vmem:[#allocation28 + $0x50] sm:$0xff]
        %v2182 = vld [vmem:[#allocation28 + $0x58] sm:$0xff]
        %v2183 = vld [vmem:[#allocation28 + $0x60] sm:$0xff]
        %v2184 = vld [vmem:[#allocation28 + $0x68] sm:$0xff]
        %v2185 = vld [vmem:[#allocation28 + $0x70] sm:$0xff]
        %v2186 = vld [vmem:[#allocation28 + $0x78] sm:$0xff]
        %v2187 = vld [vmem:[#allocation28 + $0x80] sm:$0xff]
        %v2188 = vld [vmem:[#allocation28 + $0x88] sm:$0xff]
        %v2189 = vld [vmem:[#allocation28 + $0x90] sm:$0xff]
        %v2190 = vld [vmem:[#allocation28 + $0x98] sm:$0xff]
        %v2191 = vld [vmem:[#allocation28 + $0xa0] sm:$0xff]
        %v2192 = vld [vmem:[#allocation28 + $0xa8] sm:$0xff]
        %v2193 = vld [vmem:[#allocation28 + $0xb0] sm:$0xff]
        %v2194 = vld [vmem:[#allocation28 + $0xb8] sm:$0xff]
        %v2195 = vld [vmem:[#allocation28 + $0xc0] sm:$0xff]
        %v2196 = vld [vmem:[#allocation28 + $0xc8] sm:$0xff]
        %v2197 = vld [vmem:[#allocation28 + $0xd0] sm:$0xff]
        %v2198 = vld [vmem:[#allocation28 + $0xd8] sm:$0xff]
        %v2199 = vld [vmem:[#allocation28 + $0xe0] sm:$0xff]
        %v2200 = vld [vmem:[#allocation28 + $0xe8] sm:$0xff]
        %v2201 = vld [vmem:[#allocation28 + $0xf0] sm:$0xff]
        %v2202 = vld [vmem:[#allocation28 + $0xf8] sm:$0xff]
        %v2203 = vld [vmem:[#allocation29] sm:$0x3]
        %v2205 = vlaneseq
        %v2206 = vshrl.u32 %v2205, 7
        %v2207 = vsub.s32 0, %v2206
        %v2208 = vrot.slane %v2203, %v2207
        %v2209 = vlaneseq
        %v2210 = vshrl.u32 %v2209, 7
        %v2211 = vsub.s32 1, %v2210
        %v2212 = vrot.slane %v2203, %v2211
        %v2247 = vunpack.c.l.b16 %v2171
        %v2248 = vunpack.c.h.b16 %v2171
        %v2249 = vunpack.c.l.b16 %v2172
        %v2250 = vunpack.c.h.b16 %v2172
        %v2251 = vunpack.c.l.b16 %v2173
        %v2252 = vunpack.c.h.b16 %v2173
        %v2253 = vunpack.c.l.b16 %v2174
        %v2254 = vunpack.c.h.b16 %v2174
        %v2255 = vunpack.c.l.b16 %v2175
        %v2256 = vunpack.c.h.b16 %v2175
        %v2257 = vunpack.c.l.b16 %v2176
        %v2258 = vunpack.c.h.b16 %v2176
        %v2259 = vunpack.c.l.b16 %v2177
        %v2260 = vunpack.c.h.b16 %v2177
        %v2261 = vunpack.c.l.b16 %v2178
        %v2262 = vunpack.c.h.b16 %v2178
        %v2263 = vunpack.c.l.b16 %v2179
        %v2264 = vunpack.c.h.b16 %v2179
        %v2265 = vunpack.c.l.b16 %v2180
        %v2266 = vunpack.c.h.b16 %v2180
        %v2267 = vunpack.c.l.b16 %v2181
        %v2268 = vunpack.c.h.b16 %v2181
        %v2269 = vunpack.c.l.b16 %v2182
        %v2270 = vunpack.c.h.b16 %v2182
        %v2271 = vunpack.c.l.b16 %v2183
        %v2272 = vunpack.c.h.b16 %v2183
        %v2273 = vunpack.c.l.b16 %v2184
        %v2274 = vunpack.c.h.b16 %v2184
        %v2275 = vunpack.c.l.b16 %v2185
        %v2276 = vunpack.c.h.b16 %v2185
        %v2277 = vunpack.c.l.b16 %v2186
        %v2278 = vunpack.c.h.b16 %v2186
        %v2279 = vunpack.c.l.b16 %v2187
        %v2280 = vunpack.c.h.b16 %v2187
        %v2281 = vunpack.c.l.b16 %v2188
        %v2282 = vunpack.c.h.b16 %v2188
        %v2283 = vunpack.c.l.b16 %v2189
        %v2284 = vunpack.c.h.b16 %v2189
        %v2285 = vunpack.c.l.b16 %v2190
        %v2286 = vunpack.c.h.b16 %v2190
        %v2287 = vunpack.c.l.b16 %v2191
        %v2288 = vunpack.c.h.b16 %v2191
        %v2289 = vunpack.c.l.b16 %v2192
        %v2290 = vunpack.c.h.b16 %v2192
        %v2291 = vunpack.c.l.b16 %v2193
        %v2292 = vunpack.c.h.b16 %v2193
        %v2293 = vunpack.c.l.b16 %v2194
        %v2294 = vunpack.c.h.b16 %v2194
        %v2295 = vunpack.c.l.b16 %v2195
        %v2296 = vunpack.c.h.b16 %v2195
        %v2297 = vunpack.c.l.b16 %v2196
        %v2298 = vunpack.c.h.b16 %v2196
        %v2299 = vunpack.c.l.b16 %v2197
        %v2300 = vunpack.c.h.b16 %v2197
        %v2301 = vunpack.c.l.b16 %v2198
        %v2302 = vunpack.c.h.b16 %v2198
        %v2303 = vunpack.c.l.b16 %v2199
        %v2304 = vunpack.c.h.b16 %v2199
        %v2305 = vunpack.c.l.b16 %v2200
        %v2306 = vunpack.c.h.b16 %v2200
        %v2307 = vunpack.c.l.b16 %v2201
        %v2308 = vunpack.c.h.b16 %v2201
        %v2309 = vunpack.c.l.b16 %v2202
        %v2310 = vunpack.c.h.b16 %v2202
        %v2311 = vpack.c.b16 %v2249, %v2247
        %v2312 = vpack.c.b16 %v2250, %v2248
        %v2313 = vpack.c.b16 %v2253, %v2251
        %v2314 = vpack.c.b16 %v2254, %v2252
        %v2315 = vpack.c.b16 %v2257, %v2255
        %v2316 = vpack.c.b16 %v2258, %v2256
        %v2317 = vpack.c.b16 %v2261, %v2259
        %v2318 = vpack.c.b16 %v2262, %v2260
        %v2319 = vpack.c.b16 %v2265, %v2263
        %v2320 = vpack.c.b16 %v2266, %v2264
        %v2321 = vpack.c.b16 %v2269, %v2267
        %v2322 = vpack.c.b16 %v2270, %v2268
        %v2323 = vpack.c.b16 %v2273, %v2271
        %v2324 = vpack.c.b16 %v2274, %v2272
        %v2325 = vpack.c.b16 %v2277, %v2275
        %v2326 = vpack.c.b16 %v2278, %v2276
        %v2327 = vpack.c.b16 %v2281, %v2279
        %v2328 = vpack.c.b16 %v2282, %v2280
        %v2329 = vpack.c.b16 %v2285, %v2283
        %v2330 = vpack.c.b16 %v2286, %v2284
        %v2331 = vpack.c.b16 %v2289, %v2287
        %v2332 = vpack.c.b16 %v2290, %v2288
        %v2333 = vpack.c.b16 %v2293, %v2291
        %v2334 = vpack.c.b16 %v2294, %v2292
        %v2335 = vpack.c.b16 %v2297, %v2295
        %v2336 = vpack.c.b16 %v2298, %v2296
        %v2337 = vpack.c.b16 %v2301, %v2299
        %v2338 = vpack.c.b16 %v2302, %v2300
        %v2339 = vpack.c.b16 %v2305, %v2303
        %v2340 = vpack.c.b16 %v2306, %v2304
        %v2341 = vpack.c.b16 %v2309, %v2307
        %v2342 = vpack.c.b16 %v2310, %v2308
        %2375 = vmatprep.subr.bf16.mxu0 %v2312
        %2376 = vmatpush1.bf16.msra.mxu0 %v2311
        %2377 = vmatprep.subr.bf16.mxu0 %v2314
        %2378 = vmatpush1.bf16.msra.mxu0 %v2313
        %2379 = vmatprep.subr.bf16.mxu0 %v2316
        %2380 = vmatpush1.bf16.msra.mxu0 %v2315
        %2381 = vmatprep.subr.bf16.mxu0 %v2318
        %2382 = vmatpush1.bf16.msra.mxu0 %v2317
        %2383 = vmatprep.subr.bf16.mxu0 %v2320
        %2384 = vmatpush1.bf16.msra.mxu0 %v2319
        %2385 = vmatprep.subr.bf16.mxu0 %v2322
        %2386 = vmatpush1.bf16.msra.mxu0 %v2321
        %2387 = vmatprep.subr.bf16.mxu0 %v2324
        %2388 = vmatpush1.bf16.msra.mxu0 %v2323
        %2389 = vmatprep.subr.bf16.mxu0 %v2326
        %2390 = vmatpush1.bf16.msra.mxu0 %v2325
        %2391 = vmatprep.subr.bf16.mxu0 %v2328
        %2392 = vmatpush1.bf16.msra.mxu0 %v2327
        %2393 = vmatprep.subr.bf16.mxu0 %v2330
        %2394 = vmatpush1.bf16.msra.mxu0 %v2329
        %2395 = vmatprep.subr.bf16.mxu0 %v2332
        %2396 = vmatpush1.bf16.msra.mxu0 %v2331
        %2397 = vmatprep.subr.bf16.mxu0 %v2334
        %2398 = vmatpush1.bf16.msra.mxu0 %v2333
        %2399 = vmatprep.subr.bf16.mxu0 %v2336
        %2400 = vmatpush1.bf16.msra.mxu0 %v2335
        %2401 = vmatprep.subr.bf16.mxu0 %v2338
        %2402 = vmatpush1.bf16.msra.mxu0 %v2337
        %2403 = vmatprep.subr.bf16.mxu0 %v2340
        %2404 = vmatpush1.bf16.msra.mxu0 %v2339
        %2405 = vmatprep.subr.bf16.mxu0 %v2342
        %2406 = vmatpush1.bf16.msra.mxu0 %v2341
        %2407 = vmatprep.mubr.bf16.mxu0 %v2170
        %2408 = vmatmul.mubr.bf16.gmra.mrb[0].mxu0 %v2169
        %v2409 = vpop.f32.mrb[0].mxu0
        %v2410 = vadd.f32 %v2208, %v2409
        %v2411 = vpop.f32.mrb[0].mxu0
        %v2412 = vadd.f32 %v2212, %v2411
        %v2413 = vpop.f32.mrb[0].mxu0
        %v2414 = vadd.f32 %v2208, %v2413
        %v2415 = vpop.f32.mrb[0].mxu0
        %v2416 = vadd.f32 %v2212, %v2415
        %2417 = vdwg.mxu0
        %2418 = vst [vmem:[%s909] sm:$0xff] %v2410
        %2419 = vst [vmem:[%s909 + $0x8] sm:$0xff] %v2412
        %2420 = vst [vmem:[%s909 + $0x10] sm:$0xff] %v2414
        %2421 = vst [vmem:[%s909 + $0x18] sm:$0xff] %v2416
        %s2422 = sand.u32 %s441, 1
        %s2423 = scalar_lea.sflag [#allocation7], %s2422
        %s2424 = sand.u32 %s441, 1
        %s2425 = smul.addr %s2424, 32
        %s2426 = scalar_lea.vmem [#allocation31], %s2425
        %s2427 = sand.u32 %s51, 1
        %s2428 = scalar_lea.sflag [#allocation33], %s2427
        %s2429 = sand.u32 %s467, 1
        %s2430 = smul.addr %s2429, 32
        %s2431 = scalar_lea.vmem [#allocation32], %s2430
        %s2432 = sand.u32 %s51, 1
        %s2433 = scalar_lea.sflag [#allocation33], %s2432
        %s2434 = sand.u32 %s493, 1
        %s2435 = smul.addr %s2434, 32
        %s2436 = scalar_lea.vmem [#allocation34], %s2435
        // Predicated region
        $region153: #{tpu_custom_call.1} parent=83 // pred_check
          %p2437 = pneg %p451
        $region154: #{tpu_custom_call.1} parent=83 // pred_check_branch
          %2439 = sbr.rel (%p2437) target = $region156
        $region155: #{tpu_custom_call.1} parent=83 // pred_region
          %s2440 = smul.u32 2, %s56
          %s2442 = ssub.s32 512, 512
          %2443 = vsyncadd %s2423, %s2442
          %s2444 = smul.addr %s2440, 2
          %s2445 = smul.addr %s55, 4
          %s2446 = sadd.s32 %s2444, %s2445
          %s2447 = smul.addr %s2446, 128
          %s2448 = scalar_lea.hbm %s16, %s2447
          %s2449 = sshll.u32 %s2426, 4
          %s2450 = int_to_ptr.vmem [resolvable:$true] %s2449
          %2455 = dma.vmem_to_hbm [thread:$0]  %s2450, 512, %s2448, %s2423, 256, 256, 16
        $region156: #{tpu_custom_call.1} parent=83 // pred_fallthru
          _
        // Predicated region
        $region157: #{tpu_custom_call.1} parent=83 // pred_check
          %p2456 = pneg %p477
        $region158: #{tpu_custom_call.1} parent=83 // pred_check_branch
          %2458 = sbr.rel (%p2456) target = $region160
        $region159: #{tpu_custom_call.1} parent=83 // pred_region
          %s2460 = ssub.s32 512, 512
          %2461 = vsyncadd %s2428, %s2460
          %s2462 = smul.addr %s55, 4
          %s2463 = smul.addr %s2462, 128
          %s2464 = scalar_lea.hbm %s17, %s2463
          %s2465 = sshll.u32 %s2431, 4
          %s2466 = int_to_ptr.vmem [resolvable:$true] %s2465
          %2471 = dma.vmem_to_hbm [thread:$0]  %s2466, 512, %s2464, %s2428, 256, 256, 16
        $region160: #{tpu_custom_call.1} parent=83 // pred_fallthru
          _
        // Predicated region
        $region161: #{tpu_custom_call.1} parent=83 // pred_check
          %p2472 = pneg %p503
        $region162: #{tpu_custom_call.1} parent=83 // pred_check_branch
          %2474 = sbr.rel (%p2472) target = $region164
        $region163: #{tpu_custom_call.1} parent=83 // pred_region
          %s2476 = ssub.s32 512, 512
          %2477 = vsyncadd %s2433, %s2476
          %s2478 = smul.addr %s55, 4
          %s2479 = smul.addr %s2478, 128
          %s2480 = scalar_lea.hbm %s18, %s2479
          %s2481 = sshll.u32 %s2436, 4
          %s2482 = int_to_ptr.vmem [resolvable:$true] %s2481
          %2487 = dma.vmem_to_hbm [thread:$0]  %s2482, 512, %s2480, %s2433, 256, 256, 16
        $region164: #{tpu_custom_call.1} parent=83 // pred_fallthru
          _
      $region84: #{tpu_custom_call.1} parent=5 // pred_fallthru
        _
      %p2488 = scmp.le.s32.totalorder 2, %s46
      // Predicated region
      $region165: #{tpu_custom_call.1} parent=5 // pred_check
        %p2489 = pneg %p2488
      $region166: #{tpu_custom_call.1} parent=5 // pred_check_branch
        %2491 = sbr.rel (%p2489) target = $region168
      $region167: #{tpu_custom_call.1} parent=5 // pred_region
        %s2492 = ssub.s32 %s46, 2
        // Predicated region
        $region169: #{tpu_custom_call.1} parent=167 // pred_check
          %p2493 = pneg %p457
        $region170: #{tpu_custom_call.1} parent=167 // pred_check_branch
          %2495 = sbr.rel (%p2493) target = $region172
        $region171: #{tpu_custom_call.1} parent=167 // pred_region
          %s2496 = sand.u32 %s442, 1
          %s2497 = scalar_lea.sflag [#allocation7], %s2496
          %s2498 = sand.u32 %s442, 1
          %s2499 = smul.addr %s2498, 32
          %s2500 = scalar_lea.vmem [#allocation31], %s2499
          %2501 = dma.done %s2497, 512
        $region172: #{tpu_custom_call.1} parent=167 // pred_fallthru
          _
        // Predicated region
        $region173: #{tpu_custom_call.1} parent=167 // pred_check
          %p2502 = pneg %p483
        $region174: #{tpu_custom_call.1} parent=167 // pred_check_branch
          %2504 = sbr.rel (%p2502) target = $region176
        $region175: #{tpu_custom_call.1} parent=167 // pred_region
          %s2505 = sand.u32 %s52, 1
          %s2506 = scalar_lea.sflag [#allocation33], %s2505
          %s2507 = sand.u32 %s468, 1
          %s2508 = smul.addr %s2507, 32
          %s2509 = scalar_lea.vmem [#allocation32], %s2508
          %2510 = dma.done %s2506, 512
        $region176: #{tpu_custom_call.1} parent=167 // pred_fallthru
          _
        // Predicated region
        $region177: #{tpu_custom_call.1} parent=167 // pred_check
          %p2511 = pneg %p509
        $region178: #{tpu_custom_call.1} parent=167 // pred_check_branch
          %2513 = sbr.rel (%p2511) target = $region180
        $region179: #{tpu_custom_call.1} parent=167 // pred_region
          %s2514 = sand.u32 %s52, 1
          %s2515 = scalar_lea.sflag [#allocation33], %s2514
          %s2516 = sand.u32 %s494, 1
          %s2517 = smul.addr %s2516, 32
          %s2518 = scalar_lea.vmem [#allocation34], %s2517
          %2519 = dma.done %s2515, 512
        $region180: #{tpu_custom_call.1} parent=167 // pred_fallthru
          _
      $region168: #{tpu_custom_call.1} parent=5 // pred_fallthru
        _
    $region6: #{tpu_custom_call.1} parent=1 // loop_footer
      %s50 = sadd.s32 1, %s46
    $region7: #{tpu_custom_call.1} parent=1 // loop_footer_branch
      %45 = sbr.rel target = $region3
    $region8: #{tpu_custom_call.1} parent=1 // loop_exit
      _
    %2520 = vsyncpa [#allocation6], 1
    %s2521 = scalar_lea.sflag [#allocation6], 1
    %2522 = vsyncpa %s2521, 1
    %2523 = vsyncpa [#allocation9], 1
    %s2524 = scalar_lea.sflag [#allocation9], 1
    %2525 = vsyncpa %s2524, 1
    %2526 = vsyncpa [#allocation12], 1
    %s2527 = scalar_lea.sflag [#allocation12], 1
    %2528 = vsyncpa %s2527, 1
    %2529 = vsyncpa [#allocation15], 1
    %2530 = vsyncpa [#allocation18], 1
    %2531 = vsyncpa [#allocation21], 1
    %2532 = vsyncpa [#allocation24], 1
    %2533 = vsyncpa [#allocation27], 1
    %2534 = vsyncpa [#allocation30], 1
    %2535 = vsyncpa [#allocation7], 1
    %s2536 = scalar_lea.sflag [#allocation7], 1
    %2537 = vsyncpa %s2536, 1
    %2538 = vsyncpa [#allocation33], 1
    %s2539 = scalar_lea.sflag [#allocation33], 1
    %2540 = vsyncpa %s2539, 1

</llo_original>
